<compile_context>
chip_gen: v7x
topology: tpu7x:2x2x1
jax: 0.10.0
libtpu: 0.0.40
codegen_flags: <defaults>
</compile_context>

<pallas_src>
import functools

import jax
import jax.numpy as jnp
from jax import lax
from jax.experimental import pallas as pl
from jax.experimental.pallas import tpu as pltpu

_LANES = 128   # TPU lane width
_PACK = 16     # batch rows packed per lane-dense row (16 * 8 features = 128)
_IN_F = 8
_OUT_F = 4


def _round_up(n, m):
    return ((n + m - 1) // m) * m


def actor_kernel(x_ref, w1_ref, w2_ref, w3_ref, o_ref):
    # x_ref: (tile_r, 128) -- 16 batch rows packed per row, 8 features each.
    x = x_ref[...].astype(jnp.float32)           # cast after DMA (bf16 obs ok)
    dot = functools.partial(jnp.dot, preferred_element_type=jnp.float32,
                            precision=lax.Precision.HIGHEST)
    h1 = jnp.tanh(dot(x, w1_ref[...]))           # (tile_r, 128)  MXU + EUP
    h2 = jnp.tanh(dot(h1, w2_ref[...]))          # (tile_r, 128)
    z = dot(h2, w3_ref[...])                     # (tile_r, 64)
    # Function(): -0.002 * (1 - exp(|z|)) == 0.002 * exp(|z|) - 0.002 (exact)
    o_ref[...] = (0.002 * jnp.exp(jnp.abs(z)) - 0.002).astype(o_ref.dtype)


def _pack_weights(w1, w2, w3):
    """Block-diagonal weights so the packed lane layout survives each layer.

    kron(I_16, W^T) applies W^T independently to each 8-lane feature group."""
    eye = jnp.eye(_PACK, dtype=jnp.float32)
    w1b = jnp.kron(eye, w1.T.astype(jnp.float32))   # (128, 128)
    w2b = jnp.kron(eye, w2.T.astype(jnp.float32))   # (128, 128)
    w3b = jnp.kron(eye, w3.T.astype(jnp.float32))   # (128, 64)
    return w1b, w2b, w3b


@functools.partial(jax.jit, static_argnames=("max_rows_per_step",))
def actor_forward(obs, w1, w2, w3, *, max_rows_per_step=32768):
    """obs: (B, 8); weights in PyTorch (out_features, in_features) layout:
    w1 (8,8), w2 (8,8), w3 (4,8). Returns (B, 4) float32."""
    B, F = obs.shape
    assert F == _IN_F, F
    w1b, w2b, w3b = _pack_weights(w1, w2, w3)

    # 128-row alignment keeps every block canonical (packed rows multiple of 8)
    # and guarantees padded lanes are real zeros (NaN-safe through the matmul).
    # No wrapper op at all when B is already 128-aligned.
    Bp = _round_up(max(B, 1), _LANES)
    if Bp != B:
        obs = jnp.zeros((Bp, _IN_F), obs.dtype).at[:B].set(obs)

    R = Bp // _PACK                       # packed lane-dense rows (multiple of 8)
    xp = obs.reshape(R, _LANES)           # bitcast: row-major (Bp,8) == (Bp/16,128)

    max_tile_r = max(8, ((max_rows_per_step // _PACK) // 8) * 8)
    tile_r = R if R <= max_tile_r else max_tile_r   # 1 step for small/medium B
    grid_r = pl.cdiv(R, tile_r)                     # ragged tail masked by Pallas

    out_p = pl.pallas_call(
        actor_kernel,
        out_shape=jax.ShapeDtypeStruct((R, _PACK * _OUT_F), jnp.float32),
        grid=(grid_r,),
        in_specs=[
            pl.BlockSpec((tile_r, _LANES), lambda i: (i, 0)),     # obs, pipelined
            pl.BlockSpec((_LANES, _LANES), lambda i: (0, 0)),     # weights stay
            pl.BlockSpec((_LANES, _LANES), lambda i: (0, 0)),     # resident in
            pl.BlockSpec((_LANES, _PACK * _OUT_F), lambda i: (0, 0)),  # VMEM
        ],
        out_specs=pl.BlockSpec((tile_r, _PACK * _OUT_F), lambda i: (i, 0)),
        compiler_params=pltpu.CompilerParams(
            dimension_semantics=("parallel",),   # v7x: shard batch over 2 TCs
        ),
    )(xp, w1b, w2b, w3b)

    out = out_p.reshape(Bp, _OUT_F)       # bitcast back to (Bp, 4)
    return out if Bp == B else out[:B]


def init_params(key):
    """PyTorch Linear default init (uniform +-1/sqrt(fan_in)), (out, in) layout."""
    k1, k2, k3 = jax.random.split(key, 3)
    bound = 1.0 / jnp.sqrt(8.0)
    w1 = jax.random.uniform(k1, (8, 8), jnp.float32, -bound, bound)
    w2 = jax.random.uniform(k2, (8, 8), jnp.float32, -bound, bound)
    w3 = jax.random.uniform(k3, (4, 8), jnp.float32, -bound, bound)
    return w1, w2, w3


def actor_reference(obs, w1, w2, w3):
    h1 = jnp.tanh(obs @ w1.T)
    h2 = jnp.tanh(h1 @ w2.T)
    z = h2 @ w3.T
    return -0.002 * (1.0 - jnp.exp(jnp.abs(z)))


if __name__ == "__main__":
    key = jax.random.PRNGKey(0)
    k_obs, k_params = jax.random.split(key)
    w1, w2, w3 = init_params(k_params)

    # Small per-step RL batch: single grid step, no transposes, one tiny pad.
    B = 2
    obs = jax.random.normal(k_obs, (B, 8), dtype=jnp.float32)
    out = jax.block_until_ready(actor_forward(obs, w1, w2, w3))
    ref = actor_reference(obs, w1, w2, w3)
    assert out.shape == (B, 4), out.shape
    # Tolerance leaves headroom for MXU f32 rounding (per review note).
    assert jnp.allclose(out, ref, atol=1e-4, rtol=1e-3), (out, ref)

    # Larger batch with a small max_rows_per_step to exercise the padded,
    # multi-step pipelined batch grid.
    B2 = 1000
    obs2 = jax.random.normal(k_obs, (B2, 8), dtype=jnp.float32)
    out2 = jax.block_until_ready(
        actor_forward(obs2, w1, w2, w3, max_rows_per_step=256))
    ref2 = actor_reference(obs2, w1, w2, w3)
    assert out2.shape == (B2, 4), out2.shape
    assert jnp.allclose(out2, ref2, atol=1e-4, rtol=1e-3)

    print("KERNEL_OK")
</pallas_src>

<mosaic_0001>
module attributes {stable_mosaic.version = 11 : i64} {
  func.func @actor_kernel(%arg0: i32, %arg1: memref<8x128xf32, #tpu.memory_space<vmem>>, %arg2: memref<128x128xf32, #tpu.memory_space<vmem>>, %arg3: memref<128x128xf32, #tpu.memory_space<vmem>>, %arg4: memref<128x64xf32, #tpu.memory_space<vmem>>, %arg5: memref<8x64xf32, #tpu.memory_space<vmem>>) attributes {dimension_semantics = [#tpu.dimension_semantics<parallel>], iteration_bounds = array<i64: 1>, scalar_prefetch = 0 : i64, scratch_operands = 0 : i64, tpu.core_type = #tpu.core_type<tc>, window_params = [{transform_indices = @transform_0, window_bounds = array<i64: 8, 128>}, {pipeline_mode = #tpu.pipeline_mode<synchronous>, transform_indices = @transform_1, window_bounds = array<i64: 128, 128>}, {pipeline_mode = #tpu.pipeline_mode<synchronous>, transform_indices = @transform_2, window_bounds = array<i64: 128, 128>}, {pipeline_mode = #tpu.pipeline_mode<synchronous>, transform_indices = @transform_3, window_bounds = array<i64: 128, 64>}, {transform_indices = @transform_4, window_bounds = array<i64: 8, 64>}]} {
    %c0 = arith.constant 0 : index
    %c0_0 = arith.constant 0 : index
    %0 = vector.load %arg1[%c0, %c0_0] : memref<8x128xf32, #tpu.memory_space<vmem>>, vector<8x128xf32>
    %c0_1 = arith.constant 0 : index
    %c0_2 = arith.constant 0 : index
    %1 = vector.load %arg2[%c0_1, %c0_2] : memref<128x128xf32, #tpu.memory_space<vmem>>, vector<128x128xf32>
    %cst = arith.constant dense<0.000000e+00> : vector<8x128xf32>
    %2 = tpu.matmul %0, %1, %cst {dimension_numbers = #tpu.dot_dimension_numbers<[1], [0], [0], [1], [0, 0, 1, 1], [], []>, precision = #tpu.contract_precision<fp32>} : vector<8x128xf32>, vector<128x128xf32>, vector<8x128xf32> -> vector<8x128xf32>
    %3 = math.tanh %2 : vector<8x128xf32>
    %c0_3 = arith.constant 0 : index
    %c0_4 = arith.constant 0 : index
    %4 = vector.load %arg3[%c0_3, %c0_4] : memref<128x128xf32, #tpu.memory_space<vmem>>, vector<128x128xf32>
    %cst_5 = arith.constant dense<0.000000e+00> : vector<8x128xf32>
    %5 = tpu.matmul %3, %4, %cst_5 {dimension_numbers = #tpu.dot_dimension_numbers<[1], [0], [0], [1], [0, 0, 1, 1], [], []>, precision = #tpu.contract_precision<fp32>} : vector<8x128xf32>, vector<128x128xf32>, vector<8x128xf32> -> vector<8x128xf32>
    %6 = math.tanh %5 : vector<8x128xf32>
    %c0_6 = arith.constant 0 : index
    %c0_7 = arith.constant 0 : index
    %7 = vector.load %arg4[%c0_6, %c0_7] : memref<128x64xf32, #tpu.memory_space<vmem>>, vector<128x64xf32>
    %cst_8 = arith.constant dense<0.000000e+00> : vector<8x64xf32>
    %8 = tpu.matmul %6, %7, %cst_8 {dimension_numbers = #tpu.dot_dimension_numbers<[1], [0], [0], [1], [0, 0, 1, 1], [], []>, precision = #tpu.contract_precision<fp32>} : vector<8x128xf32>, vector<128x64xf32>, vector<8x64xf32> -> vector<8x64xf32>
    %9 = math.absf %8 : vector<8x64xf32>
    %10 = math.exp %9 : vector<8x64xf32>
    %cst_9 = arith.constant 2.000000e-03 : f32
    %11 = vector.broadcast %cst_9 : f32 to vector<8x64xf32>
    %12 = arith.mulf %11, %10 : vector<8x64xf32>
    %cst_10 = arith.constant 2.000000e-03 : f32
    %13 = vector.broadcast %cst_10 : f32 to vector<8x64xf32>
    %14 = arith.subf %12, %13 : vector<8x64xf32>
    %c0_11 = arith.constant 0 : index
    %c0_12 = arith.constant 0 : index
    %15 = vector.load %arg5[%c0_11, %c0_12] : memref<8x64xf32, #tpu.memory_space<vmem>>, vector<8x64xf32>
    tpu.vector_store %arg5[%c0_11, %c0_12], %14 {strides = array<i32>} : memref<8x64xf32, #tpu.memory_space<vmem>>, vector<8x64xf32>,
    return
  }
  func.func @transform_0(%arg0: i32) -> (i32, i32) {
    %c0_i32 = arith.constant 0 : i32
    %c0_i32_0 = arith.constant 0 : i32
    return %arg0, %c0_i32 : i32, i32
  }
  func.func @transform_1(%arg0: i32) -> (i32, i32) {
    %c0_i32 = arith.constant 0 : i32
    %c0_i32_0 = arith.constant 0 : i32
    %c0_i32_1 = arith.constant 0 : i32
    return %c0_i32, %c0_i32_0 : i32, i32
  }
  func.func @transform_2(%arg0: i32) -> (i32, i32) {
    %c0_i32 = arith.constant 0 : i32
    %c0_i32_0 = arith.constant 0 : i32
    %c0_i32_1 = arith.constant 0 : i32
    return %c0_i32, %c0_i32_0 : i32, i32
  }
  func.func @transform_3(%arg0: i32) -> (i32, i32) {
    %c0_i32 = arith.constant 0 : i32
    %c0_i32_0 = arith.constant 0 : i32
    %c0_i32_1 = arith.constant 0 : i32
    return %c0_i32, %c0_i32_0 : i32, i32
  }
  func.func @transform_4(%arg0: i32) -> (i32, i32) {
    %c0_i32 = arith.constant 0 : i32
    %c0_i32_0 = arith.constant 0 : i32
    return %arg0, %c0_i32 : i32, i32
  }
}

</mosaic_0001>

<llo_original>
// kernel: actor_forward.1
$region0: #{actor_forward.1}
  #allocation0 [shape = 'u32[]', space=smem, size = 0x4, offset = 0x4, fixed_abs, tag = 'smem constant byte address 0x4 - core index']
  #allocation1 [shape = 'u32[144,128]{1,0:T(1,128)}', space=vmem, size = 0x12000, scoped, tag = 'internal scratch']
  %s0 = inlined_call_operand.vmem [shape: f32[8,128], index: 0, kind: input, shape index: {}]
  %s1 = inlined_call_operand.vmem [shape: f32[128,128], index: 1, kind: input, shape index: {}]
  %s2 = inlined_call_operand.vmem [shape: f32[128,128], index: 2, kind: input, shape index: {}]
  %s3 = inlined_call_operand.vmem [shape: f32[128,64], index: 3, kind: input, shape index: {}]
  %s4 = inlined_call_operand.vmem [shape: f32[8,64], index: 4, kind: output, shape index: {}]
  %s5 = sld [smem:[#allocation0]]
  $region26: #{actor_forward.1} parent=0
    _
  %s7 = ssub.s32 1, %s5
  %s8 = scalar_select 0, %s7, %s5
  // Predicated region
  $region2: #{actor_forward.1} parent=0 // pred_check
    _
  $region3: #{actor_forward.1} parent=0 // pred_check_branch
    %10 = sbr.rel (0) target = $region5
  $region4: #{actor_forward.1} parent=0 // pred_region
    _
  $region5: #{actor_forward.1} parent=0 // pred_fallthru
    _
  // Predicated region
  $region6: #{actor_forward.1} parent=0 // pred_check
    _
  $region7: #{actor_forward.1} parent=0 // pred_check_branch
    %12 = sbr.rel (0) target = $region9
  $region8: #{actor_forward.1} parent=0 // pred_region
    _
  $region9: #{actor_forward.1} parent=0 // pred_fallthru
    _
  // Predicated region
  $region10: #{actor_forward.1} parent=0 // pred_check
    _
  $region11: #{actor_forward.1} parent=0 // pred_check_branch
    %14 = sbr.rel (0) target = $region13
  $region12: #{actor_forward.1} parent=0 // pred_region
    _
  $region13: #{actor_forward.1} parent=0 // pred_fallthru
    _
  // Predicated region
  $region14: #{actor_forward.1} parent=0 // pred_check
    _
  $region15: #{actor_forward.1} parent=0 // pred_check_branch
    %16 = sbr.rel (0) target = $region17
  $region16: #{actor_forward.1} parent=0 // pred_region
    _
  $region17: #{actor_forward.1} parent=0 // pred_fallthru
    _
  %v17 = vld [vmem:[%s0] sm:$0xff]
  %v18 = vld [vmem:[%s1] sm:$0xff]
  %v19 = vld [vmem:[%s1 + $0x8] sm:$0xff]
  %v20 = vld [vmem:[%s1 + $0x10] sm:$0xff]
  %v21 = vld [vmem:[%s1 + $0x18] sm:$0xff]
  %v22 = vld [vmem:[%s1 + $0x20] sm:$0xff]
  %v23 = vld [vmem:[%s1 + $0x28] sm:$0xff]
  %v24 = vld [vmem:[%s1 + $0x30] sm:$0xff]
  %v25 = vld [vmem:[%s1 + $0x38] sm:$0xff]
  %v26 = vld [vmem:[%s1 + $0x40] sm:$0xff]
  %v27 = vld [vmem:[%s1 + $0x48] sm:$0xff]
  %v28 = vld [vmem:[%s1 + $0x50] sm:$0xff]
  %v29 = vld [vmem:[%s1 + $0x58] sm:$0xff]
  %v30 = vld [vmem:[%s1 + $0x60] sm:$0xff]
  %v31 = vld [vmem:[%s1 + $0x68] sm:$0xff]
  %v32 = vld [vmem:[%s1 + $0x70] sm:$0xff]
  %v33 = vld [vmem:[%s1 + $0x78] sm:$0xff]
  %34 = vmatprep.subr.mxu0 0.0
  %v35 = vand.u32 %v18, 4294901760
  %36 = vmatpush1.msra.mxu0 %v35
  %37 = vmatprep.subr.mxu0 0.0
  %v38 = vand.u32 %v19, 4294901760
  %39 = vmatpush1.msra.mxu0 %v38
  %40 = vmatprep.subr.mxu0 0.0
  %v41 = vand.u32 %v20, 4294901760
  %42 = vmatpush1.msra.mxu0 %v41
  %43 = vmatprep.subr.mxu0 0.0
  %v44 = vand.u32 %v21, 4294901760
  %45 = vmatpush1.msra.mxu0 %v44
  %46 = vmatprep.subr.mxu0 0.0
  %v47 = vand.u32 %v22, 4294901760
  %48 = vmatpush1.msra.mxu0 %v47
  %49 = vmatprep.subr.mxu0 0.0
  %v50 = vand.u32 %v23, 4294901760
  %51 = vmatpush1.msra.mxu0 %v50
  %52 = vmatprep.subr.mxu0 0.0
  %v53 = vand.u32 %v24, 4294901760
  %54 = vmatpush1.msra.mxu0 %v53
  %55 = vmatprep.subr.mxu0 0.0
  %v56 = vand.u32 %v25, 4294901760
  %57 = vmatpush1.msra.mxu0 %v56
  %58 = vmatprep.subr.mxu0 0.0
  %v59 = vand.u32 %v26, 4294901760
  %60 = vmatpush1.msra.mxu0 %v59
  %61 = vmatprep.subr.mxu0 0.0
  %v62 = vand.u32 %v27, 4294901760
  %63 = vmatpush1.msra.mxu0 %v62
  %64 = vmatprep.subr.mxu0 0.0
  %v65 = vand.u32 %v28, 4294901760
  %66 = vmatpush1.msra.mxu0 %v65
  %67 = vmatprep.subr.mxu0 0.0
  %v68 = vand.u32 %v29, 4294901760
  %69 = vmatpush1.msra.mxu0 %v68
  %70 = vmatprep.subr.mxu0 0.0
  %v71 = vand.u32 %v30, 4294901760
  %72 = vmatpush1.msra.mxu0 %v71
  %73 = vmatprep.subr.mxu0 0.0
  %v74 = vand.u32 %v31, 4294901760
  %75 = vmatpush1.msra.mxu0 %v74
  %76 = vmatprep.subr.mxu0 0.0
  %v77 = vand.u32 %v32, 4294901760
  %78 = vmatpush1.msra.mxu0 %v77
  %79 = vmatprep.subr.mxu0 0.0
  %v80 = vand.u32 %v33, 4294901760
  %81 = vmatpush1.msra.mxu0 %v80
  %82 = vmatprep.subr.mxu0 0.0
  %83 = vmatpush1.msra.mxu0 0.0
  %84 = vmatprep.subr.mxu0 0.0
  %85 = vmatpush1.msra.mxu0 0.0
  %86 = vmatprep.subr.mxu0 0.0
  %87 = vmatpush1.msra.mxu0 0.0
  %88 = vmatprep.subr.mxu0 0.0
  %89 = vmatpush1.msra.mxu0 0.0
  %90 = vmatprep.subr.mxu0 0.0
  %91 = vmatpush1.msra.mxu0 0.0
  %92 = vmatprep.subr.mxu0 0.0
  %93 = vmatpush1.msra.mxu0 0.0
  %94 = vmatprep.subr.mxu0 0.0
  %95 = vmatpush1.msra.mxu0 0.0
  %96 = vmatprep.subr.mxu0 0.0
  %97 = vmatpush1.msra.mxu0 0.0
  %98 = vmatprep.subr.mxu0 0.0
  %99 = vmatpush1.msra.mxu0 0.0
  %100 = vmatprep.subr.mxu0 0.0
  %101 = vmatpush1.msra.mxu0 0.0
  %102 = vmatprep.subr.mxu0 0.0
  %103 = vmatpush1.msra.mxu0 0.0
  %104 = vmatprep.subr.mxu0 0.0
  %105 = vmatpush1.msra.mxu0 0.0
  %106 = vmatprep.subr.mxu0 0.0
  %107 = vmatpush1.msra.mxu0 0.0
  %108 = vmatprep.subr.mxu0 0.0
  %109 = vmatpush1.msra.mxu0 0.0
  %110 = vmatprep.subr.mxu0 0.0
  %111 = vmatpush1.msra.mxu0 0.0
  %112 = vmatprep.subr.mxu0 0.0
  %113 = vmatpush1.msra.mxu0 0.0
  %114 = vmatprep.mubr.f32.mxu0 0.0
  %v115 = vand.u32 %v17, 4294901760
  %v116 = vsub.f32 %v17, %v115
  %v117 = vand.u32 %v116, 4294901760
  %v118 = vsub.f32 %v116, %v117
  %v119 = vand.u32 %v118, 4294901760
  %120 = vmatmul.mubr.f32.gmra.mrb[0].mxu0 %v119
  %v121 = vpop.f32.mrb[0].mxu0
  %v122 = vadd.f32 0.0, %v121
  %v123 = vpop.f32.mrb[0].mxu0
  %124 = vdwg.mxu0
  %125 = vmatprep.subr.mxu0 0.0
  %v126 = vand.u32 %v18, 4294901760
  %v127 = vsub.f32 %v18, %v126
  %v128 = vand.u32 %v127, 4294901760
  %v129 = vsub.f32 %v127, %v128
  %v130 = vand.u32 %v129, 4294901760
  %131 = vmatpush1.msra.mxu0 %v130
  %132 = vmatprep.subr.mxu0 0.0
  %v133 = vand.u32 %v19, 4294901760
  %v134 = vsub.f32 %v19, %v133
  %v135 = vand.u32 %v134, 4294901760
  %v136 = vsub.f32 %v134, %v135
  %v137 = vand.u32 %v136, 4294901760
  %138 = vmatpush1.msra.mxu0 %v137
  %139 = vmatprep.subr.mxu0 0.0
  %v140 = vand.u32 %v20, 4294901760
  %v141 = vsub.f32 %v20, %v140
  %v142 = vand.u32 %v141, 4294901760
  %v143 = vsub.f32 %v141, %v142
  %v144 = vand.u32 %v143, 4294901760
  %145 = vmatpush1.msra.mxu0 %v144
  %146 = vmatprep.subr.mxu0 0.0
  %v147 = vand.u32 %v21, 4294901760
  %v148 = vsub.f32 %v21, %v147
  %v149 = vand.u32 %v148, 4294901760
  %v150 = vsub.f32 %v148, %v149
  %v151 = vand.u32 %v150, 4294901760
  %152 = vmatpush1.msra.mxu0 %v151
  %153 = vmatprep.subr.mxu0 0.0
  %v154 = vand.u32 %v22, 4294901760
  %v155 = vsub.f32 %v22, %v154
  %v156 = vand.u32 %v155, 4294901760
  %v157 = vsub.f32 %v155, %v156
  %v158 = vand.u32 %v157, 4294901760
  %159 = vmatpush1.msra.mxu0 %v158
  %160 = vmatprep.subr.mxu0 0.0
  %v161 = vand.u32 %v23, 4294901760
  %v162 = vsub.f32 %v23, %v161
  %v163 = vand.u32 %v162, 4294901760
  %v164 = vsub.f32 %v162, %v163
  %v165 = vand.u32 %v164, 4294901760
  %166 = vmatpush1.msra.mxu0 %v165
  %167 = vmatprep.subr.mxu0 0.0
  %v168 = vand.u32 %v24, 4294901760
  %v169 = vsub.f32 %v24, %v168
  %v170 = vand.u32 %v169, 4294901760
  %v171 = vsub.f32 %v169, %v170
  %v172 = vand.u32 %v171, 4294901760
  %173 = vmatpush1.msra.mxu0 %v172
  %174 = vmatprep.subr.mxu0 0.0
  %v175 = vand.u32 %v25, 4294901760
  %v176 = vsub.f32 %v25, %v175
  %v177 = vand.u32 %v176, 4294901760
  %v178 = vsub.f32 %v176, %v177
  %v179 = vand.u32 %v178, 4294901760
  %180 = vmatpush1.msra.mxu0 %v179
  %181 = vmatprep.subr.mxu0 0.0
  %v182 = vand.u32 %v26, 4294901760
  %v183 = vsub.f32 %v26, %v182
  %v184 = vand.u32 %v183, 4294901760
  %v185 = vsub.f32 %v183, %v184
  %v186 = vand.u32 %v185, 4294901760
  %187 = vmatpush1.msra.mxu0 %v186
  %188 = vmatprep.subr.mxu0 0.0
  %v189 = vand.u32 %v27, 4294901760
  %v190 = vsub.f32 %v27, %v189
  %v191 = vand.u32 %v190, 4294901760
  %v192 = vsub.f32 %v190, %v191
  %v193 = vand.u32 %v192, 4294901760
  %194 = vmatpush1.msra.mxu0 %v193
  %195 = vmatprep.subr.mxu0 0.0
  %v196 = vand.u32 %v28, 4294901760
  %v197 = vsub.f32 %v28, %v196
  %v198 = vand.u32 %v197, 4294901760
  %v199 = vsub.f32 %v197, %v198
  %v200 = vand.u32 %v199, 4294901760
  %201 = vmatpush1.msra.mxu0 %v200
  %202 = vmatprep.subr.mxu0 0.0
  %v203 = vand.u32 %v29, 4294901760
  %v204 = vsub.f32 %v29, %v203
  %v205 = vand.u32 %v204, 4294901760
  %v206 = vsub.f32 %v204, %v205
  %v207 = vand.u32 %v206, 4294901760
  %208 = vmatpush1.msra.mxu0 %v207
  %209 = vmatprep.subr.mxu0 0.0
  %v210 = vand.u32 %v30, 4294901760
  %v211 = vsub.f32 %v30, %v210
  %v212 = vand.u32 %v211, 4294901760
  %v213 = vsub.f32 %v211, %v212
  %v214 = vand.u32 %v213, 4294901760
  %215 = vmatpush1.msra.mxu0 %v214
  %216 = vmatprep.subr.mxu0 0.0
  %v217 = vand.u32 %v31, 4294901760
  %v218 = vsub.f32 %v31, %v217
  %v219 = vand.u32 %v218, 4294901760
  %v220 = vsub.f32 %v218, %v219
  %v221 = vand.u32 %v220, 4294901760
  %222 = vmatpush1.msra.mxu0 %v221
  %223 = vmatprep.subr.mxu0 0.0
  %v224 = vand.u32 %v32, 4294901760
  %v225 = vsub.f32 %v32, %v224
  %v226 = vand.u32 %v225, 4294901760
  %v227 = vsub.f32 %v225, %v226
  %v228 = vand.u32 %v227, 4294901760
  %229 = vmatpush1.msra.mxu0 %v228
  %230 = vmatprep.subr.mxu0 0.0
  %v231 = vand.u32 %v33, 4294901760
  %v232 = vsub.f32 %v33, %v231
  %v233 = vand.u32 %v232, 4294901760
  %v234 = vsub.f32 %v232, %v233
  %v235 = vand.u32 %v234, 4294901760
  %236 = vmatpush1.msra.mxu0 %v235
  %237 = vmatprep.subr.mxu0 0.0
  %238 = vmatpush1.msra.mxu0 0.0
  %239 = vmatprep.subr.mxu0 0.0
  %240 = vmatpush1.msra.mxu0 0.0
  %241 = vmatprep.subr.mxu0 0.0
  %242 = vmatpush1.msra.mxu0 0.0
  %243 = vmatprep.subr.mxu0 0.0
  %244 = vmatpush1.msra.mxu0 0.0
  %245 = vmatprep.subr.mxu0 0.0
  %246 = vmatpush1.msra.mxu0 0.0
  %247 = vmatprep.subr.mxu0 0.0
  %248 = vmatpush1.msra.mxu0 0.0
  %249 = vmatprep.subr.mxu0 0.0
  %250 = vmatpush1.msra.mxu0 0.0
  %251 = vmatprep.subr.mxu0 0.0
  %252 = vmatpush1.msra.mxu0 0.0
  %253 = vmatprep.subr.mxu0 0.0
  %254 = vmatpush1.msra.mxu0 0.0
  %255 = vmatprep.subr.mxu0 0.0
  %256 = vmatpush1.msra.mxu0 0.0
  %257 = vmatprep.subr.mxu0 0.0
  %258 = vmatpush1.msra.mxu0 0.0
  %259 = vmatprep.subr.mxu0 0.0
  %260 = vmatpush1.msra.mxu0 0.0
  %261 = vmatprep.subr.mxu0 0.0
  %262 = vmatpush1.msra.mxu0 0.0
  %263 = vmatprep.subr.mxu0 0.0
  %264 = vmatpush1.msra.mxu0 0.0
  %265 = vmatprep.subr.mxu0 0.0
  %266 = vmatpush1.msra.mxu0 0.0
  %267 = vmatprep.subr.mxu0 0.0
  %268 = vmatpush1.msra.mxu0 0.0
  %269 = vmatprep.mubr.f32.mxu0 0.0
  %v270 = vand.u32 %v17, 4294901760
  %271 = vmatmul.mubr.f32.gmra.mrb[0].mxu0 %v270
  %v272 = vpop.f32.mrb[0].mxu0
  %v273 = vadd.f32 %v122, %v272
  %v274 = vpop.f32.mrb[0].mxu0
  %275 = vdwg.mxu0
  %276 = vmatprep.subr.mxu0 0.0
  %v277 = vand.u32 %v18, 4294901760
  %v278 = vsub.f32 %v18, %v277
  %279 = vmatpush1.msra.mxu0 %v278
  %280 = vmatprep.subr.mxu0 0.0
  %v281 = vand.u32 %v19, 4294901760
  %v282 = vsub.f32 %v19, %v281
  %283 = vmatpush1.msra.mxu0 %v282
  %284 = vmatprep.subr.mxu0 0.0
  %v285 = vand.u32 %v20, 4294901760
  %v286 = vsub.f32 %v20, %v285
  %287 = vmatpush1.msra.mxu0 %v286
  %288 = vmatprep.subr.mxu0 0.0
  %v289 = vand.u32 %v21, 4294901760
  %v290 = vsub.f32 %v21, %v289
  %291 = vmatpush1.msra.mxu0 %v290
  %292 = vmatprep.subr.mxu0 0.0
  %v293 = vand.u32 %v22, 4294901760
  %v294 = vsub.f32 %v22, %v293
  %295 = vmatpush1.msra.mxu0 %v294
  %296 = vmatprep.subr.mxu0 0.0
  %v297 = vand.u32 %v23, 4294901760
  %v298 = vsub.f32 %v23, %v297
  %299 = vmatpush1.msra.mxu0 %v298
  %300 = vmatprep.subr.mxu0 0.0
  %v301 = vand.u32 %v24, 4294901760
  %v302 = vsub.f32 %v24, %v301
  %303 = vmatpush1.msra.mxu0 %v302
  %304 = vmatprep.subr.mxu0 0.0
  %v305 = vand.u32 %v25, 4294901760
  %v306 = vsub.f32 %v25, %v305
  %307 = vmatpush1.msra.mxu0 %v306
  %308 = vmatprep.subr.mxu0 0.0
  %v309 = vand.u32 %v26, 4294901760
  %v310 = vsub.f32 %v26, %v309
  %311 = vmatpush1.msra.mxu0 %v310
  %312 = vmatprep.subr.mxu0 0.0
  %v313 = vand.u32 %v27, 4294901760
  %v314 = vsub.f32 %v27, %v313
  %315 = vmatpush1.msra.mxu0 %v314
  %316 = vmatprep.subr.mxu0 0.0
  %v317 = vand.u32 %v28, 4294901760
  %v318 = vsub.f32 %v28, %v317
  %319 = vmatpush1.msra.mxu0 %v318
  %320 = vmatprep.subr.mxu0 0.0
  %v321 = vand.u32 %v29, 4294901760
  %v322 = vsub.f32 %v29, %v321
  %323 = vmatpush1.msra.mxu0 %v322
  %324 = vmatprep.subr.mxu0 0.0
  %v325 = vand.u32 %v30, 4294901760
  %v326 = vsub.f32 %v30, %v325
  %327 = vmatpush1.msra.mxu0 %v326
  %328 = vmatprep.subr.mxu0 0.0
  %v329 = vand.u32 %v31, 4294901760
  %v330 = vsub.f32 %v31, %v329
  %331 = vmatpush1.msra.mxu0 %v330
  %332 = vmatprep.subr.mxu0 0.0
  %v333 = vand.u32 %v32, 4294901760
  %v334 = vsub.f32 %v32, %v333
  %335 = vmatpush1.msra.mxu0 %v334
  %336 = vmatprep.subr.mxu0 0.0
  %v337 = vand.u32 %v33, 4294901760
  %v338 = vsub.f32 %v33, %v337
  %339 = vmatpush1.msra.mxu0 %v338
  %340 = vmatprep.subr.mxu0 0.0
  %341 = vmatpush1.msra.mxu0 0.0
  %342 = vmatprep.subr.mxu0 0.0
  %343 = vmatpush1.msra.mxu0 0.0
  %344 = vmatprep.subr.mxu0 0.0
  %345 = vmatpush1.msra.mxu0 0.0
  %346 = vmatprep.subr.mxu0 0.0
  %347 = vmatpush1.msra.mxu0 0.0
  %348 = vmatprep.subr.mxu0 0.0
  %349 = vmatpush1.msra.mxu0 0.0
  %350 = vmatprep.subr.mxu0 0.0
  %351 = vmatpush1.msra.mxu0 0.0
  %352 = vmatprep.subr.mxu0 0.0
  %353 = vmatpush1.msra.mxu0 0.0
  %354 = vmatprep.subr.mxu0 0.0
  %355 = vmatpush1.msra.mxu0 0.0
  %356 = vmatprep.subr.mxu0 0.0
  %357 = vmatpush1.msra.mxu0 0.0
  %358 = vmatprep.subr.mxu0 0.0
  %359 = vmatpush1.msra.mxu0 0.0
  %360 = vmatprep.subr.mxu0 0.0
  %361 = vmatpush1.msra.mxu0 0.0
  %362 = vmatprep.subr.mxu0 0.0
  %363 = vmatpush1.msra.mxu0 0.0
  %364 = vmatprep.subr.mxu0 0.0
  %365 = vmatpush1.msra.mxu0 0.0
  %366 = vmatprep.subr.mxu0 0.0
  %367 = vmatpush1.msra.mxu0 0.0
  %368 = vmatprep.subr.mxu0 0.0
  %369 = vmatpush1.msra.mxu0 0.0
  %370 = vmatprep.subr.mxu0 0.0
  %371 = vmatpush1.msra.mxu0 0.0
  %372 = vmatprep.mubr.f32.mxu0 0.0
  %v373 = vand.u32 %v17, 4294901760
  %v374 = vsub.f32 %v17, %v373
  %375 = vmatmul.mubr.f32.gmra.mrb[0].mxu0 %v374
  %v376 = vpop.f32.mrb[0].mxu0
  %v377 = vadd.f32 %v273, %v376
  %v378 = vpop.f32.mrb[0].mxu0
  %379 = vdwg.mxu0
  %380 = vmatprep.subr.mxu0 0.0
  %v381 = vand.u32 %v18, 4294901760
  %382 = vmatpush1.msra.mxu0 %v381
  %383 = vmatprep.subr.mxu0 0.0
  %v384 = vand.u32 %v19, 4294901760
  %385 = vmatpush1.msra.mxu0 %v384
  %386 = vmatprep.subr.mxu0 0.0
  %v387 = vand.u32 %v20, 4294901760
  %388 = vmatpush1.msra.mxu0 %v387
  %389 = vmatprep.subr.mxu0 0.0
  %v390 = vand.u32 %v21, 4294901760
  %391 = vmatpush1.msra.mxu0 %v390
  %392 = vmatprep.subr.mxu0 0.0
  %v393 = vand.u32 %v22, 4294901760
  %394 = vmatpush1.msra.mxu0 %v393
  %395 = vmatprep.subr.mxu0 0.0
  %v396 = vand.u32 %v23, 4294901760
  %397 = vmatpush1.msra.mxu0 %v396
  %398 = vmatprep.subr.mxu0 0.0
  %v399 = vand.u32 %v24, 4294901760
  %400 = vmatpush1.msra.mxu0 %v399
  %401 = vmatprep.subr.mxu0 0.0
  %v402 = vand.u32 %v25, 4294901760
  %403 = vmatpush1.msra.mxu0 %v402
  %404 = vmatprep.subr.mxu0 0.0
  %v405 = vand.u32 %v26, 4294901760
  %406 = vmatpush1.msra.mxu0 %v405
  %407 = vmatprep.subr.mxu0 0.0
  %v408 = vand.u32 %v27, 4294901760
  %409 = vmatpush1.msra.mxu0 %v408
  %410 = vmatprep.subr.mxu0 0.0
  %v411 = vand.u32 %v28, 4294901760
  %412 = vmatpush1.msra.mxu0 %v411
  %413 = vmatprep.subr.mxu0 0.0
  %v414 = vand.u32 %v29, 4294901760
  %415 = vmatpush1.msra.mxu0 %v414
  %416 = vmatprep.subr.mxu0 0.0
  %v417 = vand.u32 %v30, 4294901760
  %418 = vmatpush1.msra.mxu0 %v417
  %419 = vmatprep.subr.mxu0 0.0
  %v420 = vand.u32 %v31, 4294901760
  %421 = vmatpush1.msra.mxu0 %v420
  %422 = vmatprep.subr.mxu0 0.0
  %v423 = vand.u32 %v32, 4294901760
  %424 = vmatpush1.msra.mxu0 %v423
  %425 = vmatprep.subr.mxu0 0.0
  %v426 = vand.u32 %v33, 4294901760
  %427 = vmatpush1.msra.mxu0 %v426
  %428 = vmatprep.subr.mxu0 0.0
  %429 = vmatpush1.msra.mxu0 0.0
  %430 = vmatprep.subr.mxu0 0.0
  %431 = vmatpush1.msra.mxu0 0.0
  %432 = vmatprep.subr.mxu0 0.0
  %433 = vmatpush1.msra.mxu0 0.0
  %434 = vmatprep.subr.mxu0 0.0
  %435 = vmatpush1.msra.mxu0 0.0
  %436 = vmatprep.subr.mxu0 0.0
  %437 = vmatpush1.msra.mxu0 0.0
  %438 = vmatprep.subr.mxu0 0.0
  %439 = vmatpush1.msra.mxu0 0.0
  %440 = vmatprep.subr.mxu0 0.0
  %441 = vmatpush1.msra.mxu0 0.0
  %442 = vmatprep.subr.mxu0 0.0
  %443 = vmatpush1.msra.mxu0 0.0
  %444 = vmatprep.subr.mxu0 0.0
  %445 = vmatpush1.msra.mxu0 0.0
  %446 = vmatprep.subr.mxu0 0.0
  %447 = vmatpush1.msra.mxu0 0.0
  %448 = vmatprep.subr.mxu0 0.0
  %449 = vmatpush1.msra.mxu0 0.0
  %450 = vmatprep.subr.mxu0 0.0
  %451 = vmatpush1.msra.mxu0 0.0
  %452 = vmatprep.subr.mxu0 0.0
  %453 = vmatpush1.msra.mxu0 0.0
  %454 = vmatprep.subr.mxu0 0.0
  %455 = vmatpush1.msra.mxu0 0.0
  %456 = vmatprep.subr.mxu0 0.0
  %457 = vmatpush1.msra.mxu0 0.0
  %458 = vmatprep.subr.mxu0 0.0
  %459 = vmatpush1.msra.mxu0 0.0
  %460 = vmatprep.mubr.f32.mxu0 0.0
  %v461 = vand.u32 %v17, 4294901760
  %v462 = vsub.f32 %v17, %v461
  %v463 = vand.u32 %v462, 4294901760
  %464 = vmatmul.mubr.f32.gmra.mrb[0].mxu0 %v463
  %v465 = vpop.f32.mrb[0].mxu0
  %v466 = vadd.f32 %v377, %v465
  %v467 = vpop.f32.mrb[0].mxu0
  %468 = vdwg.mxu0
  %469 = vmatprep.subr.mxu0 0.0
  %v470 = vand.u32 %v18, 4294901760
  %v471 = vsub.f32 %v18, %v470
  %v472 = vand.u32 %v471, 4294901760
  %473 = vmatpush1.msra.mxu0 %v472
  %474 = vmatprep.subr.mxu0 0.0
  %v475 = vand.u32 %v19, 4294901760
  %v476 = vsub.f32 %v19, %v475
  %v477 = vand.u32 %v476, 4294901760
  %478 = vmatpush1.msra.mxu0 %v477
  %479 = vmatprep.subr.mxu0 0.0
  %v480 = vand.u32 %v20, 4294901760
  %v481 = vsub.f32 %v20, %v480
  %v482 = vand.u32 %v481, 4294901760
  %483 = vmatpush1.msra.mxu0 %v482
  %484 = vmatprep.subr.mxu0 0.0
  %v485 = vand.u32 %v21, 4294901760
  %v486 = vsub.f32 %v21, %v485
  %v487 = vand.u32 %v486, 4294901760
  %488 = vmatpush1.msra.mxu0 %v487
  %489 = vmatprep.subr.mxu0 0.0
  %v490 = vand.u32 %v22, 4294901760
  %v491 = vsub.f32 %v22, %v490
  %v492 = vand.u32 %v491, 4294901760
  %493 = vmatpush1.msra.mxu0 %v492
  %494 = vmatprep.subr.mxu0 0.0
  %v495 = vand.u32 %v23, 4294901760
  %v496 = vsub.f32 %v23, %v495
  %v497 = vand.u32 %v496, 4294901760
  %498 = vmatpush1.msra.mxu0 %v497
  %499 = vmatprep.subr.mxu0 0.0
  %v500 = vand.u32 %v24, 4294901760
  %v501 = vsub.f32 %v24, %v500
  %v502 = vand.u32 %v501, 4294901760
  %503 = vmatpush1.msra.mxu0 %v502
  %504 = vmatprep.subr.mxu0 0.0
  %v505 = vand.u32 %v25, 4294901760
  %v506 = vsub.f32 %v25, %v505
  %v507 = vand.u32 %v506, 4294901760
  %508 = vmatpush1.msra.mxu0 %v507
  %509 = vmatprep.subr.mxu0 0.0
  %v510 = vand.u32 %v26, 4294901760
  %v511 = vsub.f32 %v26, %v510
  %v512 = vand.u32 %v511, 4294901760
  %513 = vmatpush1.msra.mxu0 %v512
  %514 = vmatprep.subr.mxu0 0.0
  %v515 = vand.u32 %v27, 4294901760
  %v516 = vsub.f32 %v27, %v515
  %v517 = vand.u32 %v516, 4294901760
  %518 = vmatpush1.msra.mxu0 %v517
  %519 = vmatprep.subr.mxu0 0.0
  %v520 = vand.u32 %v28, 4294901760
  %v521 = vsub.f32 %v28, %v520
  %v522 = vand.u32 %v521, 4294901760
  %523 = vmatpush1.msra.mxu0 %v522
  %524 = vmatprep.subr.mxu0 0.0
  %v525 = vand.u32 %v29, 4294901760
  %v526 = vsub.f32 %v29, %v525
  %v527 = vand.u32 %v526, 4294901760
  %528 = vmatpush1.msra.mxu0 %v527
  %529 = vmatprep.subr.mxu0 0.0
  %v530 = vand.u32 %v30, 4294901760
  %v531 = vsub.f32 %v30, %v530
  %v532 = vand.u32 %v531, 4294901760
  %533 = vmatpush1.msra.mxu0 %v532
  %534 = vmatprep.subr.mxu0 0.0
  %v535 = vand.u32 %v31, 4294901760
  %v536 = vsub.f32 %v31, %v535
  %v537 = vand.u32 %v536, 4294901760
  %538 = vmatpush1.msra.mxu0 %v537
  %539 = vmatprep.subr.mxu0 0.0
  %v540 = vand.u32 %v32, 4294901760
  %v541 = vsub.f32 %v32, %v540
  %v542 = vand.u32 %v541, 4294901760
  %543 = vmatpush1.msra.mxu0 %v542
  %544 = vmatprep.subr.mxu0 0.0
  %v545 = vand.u32 %v33, 4294901760
  %v546 = vsub.f32 %v33, %v545
  %v547 = vand.u32 %v546, 4294901760
  %548 = vmatpush1.msra.mxu0 %v547
  %549 = vmatprep.subr.mxu0 0.0
  %550 = vmatpush1.msra.mxu0 0.0
  %551 = vmatprep.subr.mxu0 0.0
  %552 = vmatpush1.msra.mxu0 0.0
  %553 = vmatprep.subr.mxu0 0.0
  %554 = vmatpush1.msra.mxu0 0.0
  %555 = vmatprep.subr.mxu0 0.0
  %556 = vmatpush1.msra.mxu0 0.0
  %557 = vmatprep.subr.mxu0 0.0
  %558 = vmatpush1.msra.mxu0 0.0
  %559 = vmatprep.subr.mxu0 0.0
  %560 = vmatpush1.msra.mxu0 0.0
  %561 = vmatprep.subr.mxu0 0.0
  %562 = vmatpush1.msra.mxu0 0.0
  %563 = vmatprep.subr.mxu0 0.0
  %564 = vmatpush1.msra.mxu0 0.0
  %565 = vmatprep.subr.mxu0 0.0
  %566 = vmatpush1.msra.mxu0 0.0
  %567 = vmatprep.subr.mxu0 0.0
  %568 = vmatpush1.msra.mxu0 0.0
  %569 = vmatprep.subr.mxu0 0.0
  %570 = vmatpush1.msra.mxu0 0.0
  %571 = vmatprep.subr.mxu0 0.0
  %572 = vmatpush1.msra.mxu0 0.0
  %573 = vmatprep.subr.mxu0 0.0
  %574 = vmatpush1.msra.mxu0 0.0
  %575 = vmatprep.subr.mxu0 0.0
  %576 = vmatpush1.msra.mxu0 0.0
  %577 = vmatprep.subr.mxu0 0.0
  %578 = vmatpush1.msra.mxu0 0.0
  %579 = vmatprep.subr.mxu0 0.0
  %580 = vmatpush1.msra.mxu0 0.0
  %581 = vmatprep.mubr.f32.mxu0 0.0
  %v582 = vand.u32 %v17, 4294901760
  %583 = vmatmul.mubr.f32.gmra.mrb[0].mxu0 %v582
  %v584 = vpop.f32.mrb[0].mxu0
  %v585 = vadd.f32 %v466, %v584
  %v586 = vpop.f32.mrb[0].mxu0
  %587 = vdwg.mxu0
  %588 = vmatprep.subr.mxu0 0.0
  %v589 = vand.u32 %v18, 4294901760
  %590 = vmatpush1.msra.mxu0 %v589
  %591 = vmatprep.subr.mxu0 0.0
  %v592 = vand.u32 %v19, 4294901760
  %593 = vmatpush1.msra.mxu0 %v592
  %594 = vmatprep.subr.mxu0 0.0
  %v595 = vand.u32 %v20, 4294901760
  %596 = vmatpush1.msra.mxu0 %v595
  %597 = vmatprep.subr.mxu0 0.0
  %v598 = vand.u32 %v21, 4294901760
  %599 = vmatpush1.msra.mxu0 %v598
  %600 = vmatprep.subr.mxu0 0.0
  %v601 = vand.u32 %v22, 4294901760
  %602 = vmatpush1.msra.mxu0 %v601
  %603 = vmatprep.subr.mxu0 0.0
  %v604 = vand.u32 %v23, 4294901760
  %605 = vmatpush1.msra.mxu0 %v604
  %606 = vmatprep.subr.mxu0 0.0
  %v607 = vand.u32 %v24, 4294901760
  %608 = vmatpush1.msra.mxu0 %v607
  %609 = vmatprep.subr.mxu0 0.0
  %v610 = vand.u32 %v25, 4294901760
  %611 = vmatpush1.msra.mxu0 %v610
  %612 = vmatprep.subr.mxu0 0.0
  %v613 = vand.u32 %v26, 4294901760
  %614 = vmatpush1.msra.mxu0 %v613
  %615 = vmatprep.subr.mxu0 0.0
  %v616 = vand.u32 %v27, 4294901760
  %617 = vmatpush1.msra.mxu0 %v616
  %618 = vmatprep.subr.mxu0 0.0
  %v619 = vand.u32 %v28, 4294901760
  %620 = vmatpush1.msra.mxu0 %v619
  %621 = vmatprep.subr.mxu0 0.0
  %v622 = vand.u32 %v29, 4294901760
  %623 = vmatpush1.msra.mxu0 %v622
  %624 = vmatprep.subr.mxu0 0.0
  %v625 = vand.u32 %v30, 4294901760
  %626 = vmatpush1.msra.mxu0 %v625
  %627 = vmatprep.subr.mxu0 0.0
  %v628 = vand.u32 %v31, 4294901760
  %629 = vmatpush1.msra.mxu0 %v628
  %630 = vmatprep.subr.mxu0 0.0
  %v631 = vand.u32 %v32, 4294901760
  %632 = vmatpush1.msra.mxu0 %v631
  %633 = vmatprep.subr.mxu0 0.0
  %v634 = vand.u32 %v33, 4294901760
  %635 = vmatpush1.msra.mxu0 %v634
  %636 = vmatprep.subr.mxu0 0.0
  %637 = vmatpush1.msra.mxu0 0.0
  %638 = vmatprep.subr.mxu0 0.0
  %639 = vmatpush1.msra.mxu0 0.0
  %640 = vmatprep.subr.mxu0 0.0
  %641 = vmatpush1.msra.mxu0 0.0
  %642 = vmatprep.subr.mxu0 0.0
  %643 = vmatpush1.msra.mxu0 0.0
  %644 = vmatprep.subr.mxu0 0.0
  %645 = vmatpush1.msra.mxu0 0.0
  %646 = vmatprep.subr.mxu0 0.0
  %647 = vmatpush1.msra.mxu0 0.0
  %648 = vmatprep.subr.mxu0 0.0
  %649 = vmatpush1.msra.mxu0 0.0
  %650 = vmatprep.subr.mxu0 0.0
  %651 = vmatpush1.msra.mxu0 0.0
  %652 = vmatprep.subr.mxu0 0.0
  %653 = vmatpush1.msra.mxu0 0.0
  %654 = vmatprep.subr.mxu0 0.0
  %655 = vmatpush1.msra.mxu0 0.0
  %656 = vmatprep.subr.mxu0 0.0
  %657 = vmatpush1.msra.mxu0 0.0
  %658 = vmatprep.subr.mxu0 0.0
  %659 = vmatpush1.msra.mxu0 0.0
  %660 = vmatprep.subr.mxu0 0.0
  %661 = vmatpush1.msra.mxu0 0.0
  %662 = vmatprep.subr.mxu0 0.0
  %663 = vmatpush1.msra.mxu0 0.0
  %664 = vmatprep.subr.mxu0 0.0
  %665 = vmatpush1.msra.mxu0 0.0
  %666 = vmatprep.subr.mxu0 0.0
  %667 = vmatpush1.msra.mxu0 0.0
  %668 = vmatprep.mubr.f32.mxu0 0.0
  %v669 = vand.u32 %v17, 4294901760
  %670 = vmatmul.mubr.f32.gmra.mrb[0].mxu0 %v669
  %v671 = vpop.f32.mrb[0].mxu0
  %v672 = vadd.f32 %v585, %v671
  %v673 = vpop.f32.mrb[0].mxu0
  %674 = vdwg.mxu0
  %v675 = vtanh.pop %v672
  %v676 = vld [vmem:[%s2] sm:$0xff]
  %v677 = vld [vmem:[%s2 + $0x8] sm:$0xff]
  %v678 = vld [vmem:[%s2 + $0x10] sm:$0xff]
  %v679 = vld [vmem:[%s2 + $0x18] sm:$0xff]
  %v680 = vld [vmem:[%s2 + $0x20] sm:$0xff]
  %v681 = vld [vmem:[%s2 + $0x28] sm:$0xff]
  %v682 = vld [vmem:[%s2 + $0x30] sm:$0xff]
  %v683 = vld [vmem:[%s2 + $0x38] sm:$0xff]
  %v684 = vld [vmem:[%s2 + $0x40] sm:$0xff]
  %v685 = vld [vmem:[%s2 + $0x48] sm:$0xff]
  %v686 = vld [vmem:[%s2 + $0x50] sm:$0xff]
  %v687 = vld [vmem:[%s2 + $0x58] sm:$0xff]
  %v688 = vld [vmem:[%s2 + $0x60] sm:$0xff]
  %v689 = vld [vmem:[%s2 + $0x68] sm:$0xff]
  %v690 = vld [vmem:[%s2 + $0x70] sm:$0xff]
  %v691 = vld [vmem:[%s2 + $0x78] sm:$0xff]
  %692 = vmatprep.subr.mxu0 0.0
  %v693 = vand.u32 %v676, 4294901760
  %694 = vmatpush1.msra.mxu0 %v693
  %695 = vmatprep.subr.mxu0 0.0
  %v696 = vand.u32 %v677, 4294901760
  %697 = vmatpush1.msra.mxu0 %v696
  %698 = vmatprep.subr.mxu0 0.0
  %v699 = vand.u32 %v678, 4294901760
  %700 = vmatpush1.msra.mxu0 %v699
  %701 = vmatprep.subr.mxu0 0.0
  %v702 = vand.u32 %v679, 4294901760
  %703 = vmatpush1.msra.mxu0 %v702
  %704 = vmatprep.subr.mxu0 0.0
  %v705 = vand.u32 %v680, 4294901760
  %706 = vmatpush1.msra.mxu0 %v705
  %707 = vmatprep.subr.mxu0 0.0
  %v708 = vand.u32 %v681, 4294901760
  %709 = vmatpush1.msra.mxu0 %v708
  %710 = vmatprep.subr.mxu0 0.0
  %v711 = vand.u32 %v682, 4294901760
  %712 = vmatpush1.msra.mxu0 %v711
  %713 = vmatprep.subr.mxu0 0.0
  %v714 = vand.u32 %v683, 4294901760
  %715 = vmatpush1.msra.mxu0 %v714
  %716 = vmatprep.subr.mxu0 0.0
  %v717 = vand.u32 %v684, 4294901760
  %718 = vmatpush1.msra.mxu0 %v717
  %719 = vmatprep.subr.mxu0 0.0
  %v720 = vand.u32 %v685, 4294901760
  %721 = vmatpush1.msra.mxu0 %v720
  %722 = vmatprep.subr.mxu0 0.0
  %v723 = vand.u32 %v686, 4294901760
  %724 = vmatpush1.msra.mxu0 %v723
  %725 = vmatprep.subr.mxu0 0.0
  %v726 = vand.u32 %v687, 4294901760
  %727 = vmatpush1.msra.mxu0 %v726
  %728 = vmatprep.subr.mxu0 0.0
  %v729 = vand.u32 %v688, 4294901760
  %730 = vmatpush1.msra.mxu0 %v729
  %731 = vmatprep.subr.mxu0 0.0
  %v732 = vand.u32 %v689, 4294901760
  %733 = vmatpush1.msra.mxu0 %v732
  %734 = vmatprep.subr.mxu0 0.0
  %v735 = vand.u32 %v690, 4294901760
  %736 = vmatpush1.msra.mxu0 %v735
  %737 = vmatprep.subr.mxu0 0.0
  %v738 = vand.u32 %v691, 4294901760
  %739 = vmatpush1.msra.mxu0 %v738
  %740 = vmatprep.subr.mxu0 0.0
  %741 = vmatpush1.msra.mxu0 0.0
  %742 = vmatprep.subr.mxu0 0.0
  %743 = vmatpush1.msra.mxu0 0.0
  %744 = vmatprep.subr.mxu0 0.0
  %745 = vmatpush1.msra.mxu0 0.0
  %746 = vmatprep.subr.mxu0 0.0
  %747 = vmatpush1.msra.mxu0 0.0
  %748 = vmatprep.subr.mxu0 0.0
  %749 = vmatpush1.msra.mxu0 0.0
  %750 = vmatprep.subr.mxu0 0.0
  %751 = vmatpush1.msra.mxu0 0.0
  %752 = vmatprep.subr.mxu0 0.0
  %753 = vmatpush1.msra.mxu0 0.0
  %754 = vmatprep.subr.mxu0 0.0
  %755 = vmatpush1.msra.mxu0 0.0
  %756 = vmatprep.subr.mxu0 0.0
  %757 = vmatpush1.msra.mxu0 0.0
  %758 = vmatprep.subr.mxu0 0.0
  %759 = vmatpush1.msra.mxu0 0.0
  %760 = vmatprep.subr.mxu0 0.0
  %761 = vmatpush1.msra.mxu0 0.0
  %762 = vmatprep.subr.mxu0 0.0
  %763 = vmatpush1.msra.mxu0 0.0
  %764 = vmatprep.subr.mxu0 0.0
  %765 = vmatpush1.msra.mxu0 0.0
  %766 = vmatprep.subr.mxu0 0.0
  %767 = vmatpush1.msra.mxu0 0.0
  %768 = vmatprep.subr.mxu0 0.0
  %769 = vmatpush1.msra.mxu0 0.0
  %770 = vmatprep.subr.mxu0 0.0
  %771 = vmatpush1.msra.mxu0 0.0
  %772 = vmatprep.mubr.f32.mxu0 0.0
  %v773 = vand.u32 %v675, 4294901760
  %v774 = vsub.f32 %v675, %v773
  %v775 = vand.u32 %v774, 4294901760
  %v776 = vsub.f32 %v774, %v775
  %v777 = vand.u32 %v776, 4294901760
  %778 = vmatmul.mubr.f32.gmra.mrb[0].mxu0 %v777
  %v779 = vpop.f32.mrb[0].mxu0
  %v780 = vadd.f32 0.0, %v779
  %v781 = vpop.f32.mrb[0].mxu0
  %782 = vdwg.mxu0
  %783 = vmatprep.subr.mxu0 0.0
  %v784 = vand.u32 %v676, 4294901760
  %v785 = vsub.f32 %v676, %v784
  %v786 = vand.u32 %v785, 4294901760
  %v787 = vsub.f32 %v785, %v786
  %v788 = vand.u32 %v787, 4294901760
  %789 = vmatpush1.msra.mxu0 %v788
  %790 = vmatprep.subr.mxu0 0.0
  %v791 = vand.u32 %v677, 4294901760
  %v792 = vsub.f32 %v677, %v791
  %v793 = vand.u32 %v792, 4294901760
  %v794 = vsub.f32 %v792, %v793
  %v795 = vand.u32 %v794, 4294901760
  %796 = vmatpush1.msra.mxu0 %v795
  %797 = vmatprep.subr.mxu0 0.0
  %v798 = vand.u32 %v678, 4294901760
  %v799 = vsub.f32 %v678, %v798
  %v800 = vand.u32 %v799, 4294901760
  %v801 = vsub.f32 %v799, %v800
  %v802 = vand.u32 %v801, 4294901760
  %803 = vmatpush1.msra.mxu0 %v802
  %804 = vmatprep.subr.mxu0 0.0
  %v805 = vand.u32 %v679, 4294901760
  %v806 = vsub.f32 %v679, %v805
  %v807 = vand.u32 %v806, 4294901760
  %v808 = vsub.f32 %v806, %v807
  %v809 = vand.u32 %v808, 4294901760
  %810 = vmatpush1.msra.mxu0 %v809
  %811 = vmatprep.subr.mxu0 0.0
  %v812 = vand.u32 %v680, 4294901760
  %v813 = vsub.f32 %v680, %v812
  %v814 = vand.u32 %v813, 4294901760
  %v815 = vsub.f32 %v813, %v814
  %v816 = vand.u32 %v815, 4294901760
  %817 = vmatpush1.msra.mxu0 %v816
  %818 = vmatprep.subr.mxu0 0.0
  %v819 = vand.u32 %v681, 4294901760
  %v820 = vsub.f32 %v681, %v819
  %v821 = vand.u32 %v820, 4294901760
  %v822 = vsub.f32 %v820, %v821
  %v823 = vand.u32 %v822, 4294901760
  %824 = vmatpush1.msra.mxu0 %v823
  %825 = vmatprep.subr.mxu0 0.0
  %v826 = vand.u32 %v682, 4294901760
  %v827 = vsub.f32 %v682, %v826
  %v828 = vand.u32 %v827, 4294901760
  %v829 = vsub.f32 %v827, %v828
  %v830 = vand.u32 %v829, 4294901760
  %831 = vmatpush1.msra.mxu0 %v830
  %832 = vmatprep.subr.mxu0 0.0
  %v833 = vand.u32 %v683, 4294901760
  %v834 = vsub.f32 %v683, %v833
  %v835 = vand.u32 %v834, 4294901760
  %v836 = vsub.f32 %v834, %v835
  %v837 = vand.u32 %v836, 4294901760
  %838 = vmatpush1.msra.mxu0 %v837
  %839 = vmatprep.subr.mxu0 0.0
  %v840 = vand.u32 %v684, 4294901760
  %v841 = vsub.f32 %v684, %v840
  %v842 = vand.u32 %v841, 4294901760
  %v843 = vsub.f32 %v841, %v842
  %v844 = vand.u32 %v843, 4294901760
  %845 = vmatpush1.msra.mxu0 %v844
  %846 = vmatprep.subr.mxu0 0.0
  %v847 = vand.u32 %v685, 4294901760
  %v848 = vsub.f32 %v685, %v847
  %v849 = vand.u32 %v848, 4294901760
  %v850 = vsub.f32 %v848, %v849
  %v851 = vand.u32 %v850, 4294901760
  %852 = vmatpush1.msra.mxu0 %v851
  %853 = vmatprep.subr.mxu0 0.0
  %v854 = vand.u32 %v686, 4294901760
  %v855 = vsub.f32 %v686, %v854
  %v856 = vand.u32 %v855, 4294901760
  %v857 = vsub.f32 %v855, %v856
  %v858 = vand.u32 %v857, 4294901760
  %859 = vmatpush1.msra.mxu0 %v858
  %860 = vmatprep.subr.mxu0 0.0
  %v861 = vand.u32 %v687, 4294901760
  %v862 = vsub.f32 %v687, %v861
  %v863 = vand.u32 %v862, 4294901760
  %v864 = vsub.f32 %v862, %v863
  %v865 = vand.u32 %v864, 4294901760
  %866 = vmatpush1.msra.mxu0 %v865
  %867 = vmatprep.subr.mxu0 0.0
  %v868 = vand.u32 %v688, 4294901760
  %v869 = vsub.f32 %v688, %v868
  %v870 = vand.u32 %v869, 4294901760
  %v871 = vsub.f32 %v869, %v870
  %v872 = vand.u32 %v871, 4294901760
  %873 = vmatpush1.msra.mxu0 %v872
  %874 = vmatprep.subr.mxu0 0.0
  %v875 = vand.u32 %v689, 4294901760
  %v876 = vsub.f32 %v689, %v875
  %v877 = vand.u32 %v876, 4294901760
  %v878 = vsub.f32 %v876, %v877
  %v879 = vand.u32 %v878, 4294901760
  %880 = vmatpush1.msra.mxu0 %v879
  %881 = vmatprep.subr.mxu0 0.0
  %v882 = vand.u32 %v690, 4294901760
  %v883 = vsub.f32 %v690, %v882
  %v884 = vand.u32 %v883, 4294901760
  %v885 = vsub.f32 %v883, %v884
  %v886 = vand.u32 %v885, 4294901760
  %887 = vmatpush1.msra.mxu0 %v886
  %888 = vmatprep.subr.mxu0 0.0
  %v889 = vand.u32 %v691, 4294901760
  %v890 = vsub.f32 %v691, %v889
  %v891 = vand.u32 %v890, 4294901760
  %v892 = vsub.f32 %v890, %v891
  %v893 = vand.u32 %v892, 4294901760
  %894 = vmatpush1.msra.mxu0 %v893
  %895 = vmatprep.subr.mxu0 0.0
  %896 = vmatpush1.msra.mxu0 0.0
  %897 = vmatprep.subr.mxu0 0.0
  %898 = vmatpush1.msra.mxu0 0.0
  %899 = vmatprep.subr.mxu0 0.0
  %900 = vmatpush1.msra.mxu0 0.0
  %901 = vmatprep.subr.mxu0 0.0
  %902 = vmatpush1.msra.mxu0 0.0
  %903 = vmatprep.subr.mxu0 0.0
  %904 = vmatpush1.msra.mxu0 0.0
  %905 = vmatprep.subr.mxu0 0.0
  %906 = vmatpush1.msra.mxu0 0.0
  %907 = vmatprep.subr.mxu0 0.0
  %908 = vmatpush1.msra.mxu0 0.0
  %909 = vmatprep.subr.mxu0 0.0
  %910 = vmatpush1.msra.mxu0 0.0
  %911 = vmatprep.subr.mxu0 0.0
  %912 = vmatpush1.msra.mxu0 0.0
  %913 = vmatprep.subr.mxu0 0.0
  %914 = vmatpush1.msra.mxu0 0.0
  %915 = vmatprep.subr.mxu0 0.0
  %916 = vmatpush1.msra.mxu0 0.0
  %917 = vmatprep.subr.mxu0 0.0
  %918 = vmatpush1.msra.mxu0 0.0
  %919 = vmatprep.subr.mxu0 0.0
  %920 = vmatpush1.msra.mxu0 0.0
  %921 = vmatprep.subr.mxu0 0.0
  %922 = vmatpush1.msra.mxu0 0.0
  %923 = vmatprep.subr.mxu0 0.0
  %924 = vmatpush1.msra.mxu0 0.0
  %925 = vmatprep.subr.mxu0 0.0
  %926 = vmatpush1.msra.mxu0 0.0
  %927 = vmatprep.mubr.f32.mxu0 0.0
  %v928 = vand.u32 %v675, 4294901760
  %929 = vmatmul.mubr.f32.gmra.mrb[0].mxu0 %v928
  %v930 = vpop.f32.mrb[0].mxu0
  %v931 = vadd.f32 %v780, %v930
  %v932 = vpop.f32.mrb[0].mxu0
  %933 = vdwg.mxu0
  %934 = vmatprep.subr.mxu0 0.0
  %v935 = vand.u32 %v676, 4294901760
  %v936 = vsub.f32 %v676, %v935
  %937 = vmatpush1.msra.mxu0 %v936
  %938 = vmatprep.subr.mxu0 0.0
  %v939 = vand.u32 %v677, 4294901760
  %v940 = vsub.f32 %v677, %v939
  %941 = vmatpush1.msra.mxu0 %v940
  %942 = vmatprep.subr.mxu0 0.0
  %v943 = vand.u32 %v678, 4294901760
  %v944 = vsub.f32 %v678, %v943
  %945 = vmatpush1.msra.mxu0 %v944
  %946 = vmatprep.subr.mxu0 0.0
  %v947 = vand.u32 %v679, 4294901760
  %v948 = vsub.f32 %v679, %v947
  %949 = vmatpush1.msra.mxu0 %v948
  %950 = vmatprep.subr.mxu0 0.0
  %v951 = vand.u32 %v680, 4294901760
  %v952 = vsub.f32 %v680, %v951
  %953 = vmatpush1.msra.mxu0 %v952
  %954 = vmatprep.subr.mxu0 0.0
  %v955 = vand.u32 %v681, 4294901760
  %v956 = vsub.f32 %v681, %v955
  %957 = vmatpush1.msra.mxu0 %v956
  %958 = vmatprep.subr.mxu0 0.0
  %v959 = vand.u32 %v682, 4294901760
  %v960 = vsub.f32 %v682, %v959
  %961 = vmatpush1.msra.mxu0 %v960
  %962 = vmatprep.subr.mxu0 0.0
  %v963 = vand.u32 %v683, 4294901760
  %v964 = vsub.f32 %v683, %v963
  %965 = vmatpush1.msra.mxu0 %v964
  %966 = vmatprep.subr.mxu0 0.0
  %v967 = vand.u32 %v684, 4294901760
  %v968 = vsub.f32 %v684, %v967
  %969 = vmatpush1.msra.mxu0 %v968
  %970 = vmatprep.subr.mxu0 0.0
  %v971 = vand.u32 %v685, 4294901760
  %v972 = vsub.f32 %v685, %v971
  %973 = vmatpush1.msra.mxu0 %v972
  %974 = vmatprep.subr.mxu0 0.0
  %v975 = vand.u32 %v686, 4294901760
  %v976 = vsub.f32 %v686, %v975
  %977 = vmatpush1.msra.mxu0 %v976
  %978 = vmatprep.subr.mxu0 0.0
  %v979 = vand.u32 %v687, 4294901760
  %v980 = vsub.f32 %v687, %v979
  %981 = vmatpush1.msra.mxu0 %v980
  %982 = vmatprep.subr.mxu0 0.0
  %v983 = vand.u32 %v688, 4294901760
  %v984 = vsub.f32 %v688, %v983
  %985 = vmatpush1.msra.mxu0 %v984
  %986 = vmatprep.subr.mxu0 0.0
  %v987 = vand.u32 %v689, 4294901760
  %v988 = vsub.f32 %v689, %v987
  %989 = vmatpush1.msra.mxu0 %v988
  %990 = vmatprep.subr.mxu0 0.0
  %v991 = vand.u32 %v690, 4294901760
  %v992 = vsub.f32 %v690, %v991
  %993 = vmatpush1.msra.mxu0 %v992
  %994 = vmatprep.subr.mxu0 0.0
  %v995 = vand.u32 %v691, 4294901760
  %v996 = vsub.f32 %v691, %v995
  %997 = vmatpush1.msra.mxu0 %v996
  %998 = vmatprep.subr.mxu0 0.0
  %999 = vmatpush1.msra.mxu0 0.0
  %1000 = vmatprep.subr.mxu0 0.0
  %1001 = vmatpush1.msra.mxu0 0.0
  %1002 = vmatprep.subr.mxu0 0.0
  %1003 = vmatpush1.msra.mxu0 0.0
  %1004 = vmatprep.subr.mxu0 0.0
  %1005 = vmatpush1.msra.mxu0 0.0
  %1006 = vmatprep.subr.mxu0 0.0
  %1007 = vmatpush1.msra.mxu0 0.0
  %1008 = vmatprep.subr.mxu0 0.0
  %1009 = vmatpush1.msra.mxu0 0.0
  %1010 = vmatprep.subr.mxu0 0.0
  %1011 = vmatpush1.msra.mxu0 0.0
  %1012 = vmatprep.subr.mxu0 0.0
  %1013 = vmatpush1.msra.mxu0 0.0
  %1014 = vmatprep.subr.mxu0 0.0
  %1015 = vmatpush1.msra.mxu0 0.0
  %1016 = vmatprep.subr.mxu0 0.0
  %1017 = vmatpush1.msra.mxu0 0.0
  %1018 = vmatprep.subr.mxu0 0.0
  %1019 = vmatpush1.msra.mxu0 0.0
  %1020 = vmatprep.subr.mxu0 0.0
  %1021 = vmatpush1.msra.mxu0 0.0
  %1022 = vmatprep.subr.mxu0 0.0
  %1023 = vmatpush1.msra.mxu0 0.0
  %1024 = vmatprep.subr.mxu0 0.0
  %1025 = vmatpush1.msra.mxu0 0.0
  %1026 = vmatprep.subr.mxu0 0.0
  %1027 = vmatpush1.msra.mxu0 0.0
  %1028 = vmatprep.subr.mxu0 0.0
  %1029 = vmatpush1.msra.mxu0 0.0
  %1030 = vmatprep.mubr.f32.mxu0 0.0
  %v1031 = vand.u32 %v675, 4294901760
  %v1032 = vsub.f32 %v675, %v1031
  %1033 = vmatmul.mubr.f32.gmra.mrb[0].mxu0 %v1032
  %v1034 = vpop.f32.mrb[0].mxu0
  %v1035 = vadd.f32 %v931, %v1034
  %v1036 = vpop.f32.mrb[0].mxu0
  %1037 = vdwg.mxu0
  %1038 = vmatprep.subr.mxu0 0.0
  %v1039 = vand.u32 %v676, 4294901760
  %1040 = vmatpush1.msra.mxu0 %v1039
  %1041 = vmatprep.subr.mxu0 0.0
  %v1042 = vand.u32 %v677, 4294901760
  %1043 = vmatpush1.msra.mxu0 %v1042
  %1044 = vmatprep.subr.mxu0 0.0
  %v1045 = vand.u32 %v678, 4294901760
  %1046 = vmatpush1.msra.mxu0 %v1045
  %1047 = vmatprep.subr.mxu0 0.0
  %v1048 = vand.u32 %v679, 4294901760
  %1049 = vmatpush1.msra.mxu0 %v1048
  %1050 = vmatprep.subr.mxu0 0.0
  %v1051 = vand.u32 %v680, 4294901760
  %1052 = vmatpush1.msra.mxu0 %v1051
  %1053 = vmatprep.subr.mxu0 0.0
  %v1054 = vand.u32 %v681, 4294901760
  %1055 = vmatpush1.msra.mxu0 %v1054
  %1056 = vmatprep.subr.mxu0 0.0
  %v1057 = vand.u32 %v682, 4294901760
  %1058 = vmatpush1.msra.mxu0 %v1057
  %1059 = vmatprep.subr.mxu0 0.0
  %v1060 = vand.u32 %v683, 4294901760
  %1061 = vmatpush1.msra.mxu0 %v1060
  %1062 = vmatprep.subr.mxu0 0.0
  %v1063 = vand.u32 %v684, 4294901760
  %1064 = vmatpush1.msra.mxu0 %v1063
  %1065 = vmatprep.subr.mxu0 0.0
  %v1066 = vand.u32 %v685, 4294901760
  %1067 = vmatpush1.msra.mxu0 %v1066
  %1068 = vmatprep.subr.mxu0 0.0
  %v1069 = vand.u32 %v686, 4294901760
  %1070 = vmatpush1.msra.mxu0 %v1069
  %1071 = vmatprep.subr.mxu0 0.0
  %v1072 = vand.u32 %v687, 4294901760
  %1073 = vmatpush1.msra.mxu0 %v1072
  %1074 = vmatprep.subr.mxu0 0.0
  %v1075 = vand.u32 %v688, 4294901760
  %1076 = vmatpush1.msra.mxu0 %v1075
  %1077 = vmatprep.subr.mxu0 0.0
  %v1078 = vand.u32 %v689, 4294901760
  %1079 = vmatpush1.msra.mxu0 %v1078
  %1080 = vmatprep.subr.mxu0 0.0
  %v1081 = vand.u32 %v690, 4294901760
  %1082 = vmatpush1.msra.mxu0 %v1081
  %1083 = vmatprep.subr.mxu0 0.0
  %v1084 = vand.u32 %v691, 4294901760
  %1085 = vmatpush1.msra.mxu0 %v1084
  %1086 = vmatprep.subr.mxu0 0.0
  %1087 = vmatpush1.msra.mxu0 0.0
  %1088 = vmatprep.subr.mxu0 0.0
  %1089 = vmatpush1.msra.mxu0 0.0
  %1090 = vmatprep.subr.mxu0 0.0
  %1091 = vmatpush1.msra.mxu0 0.0
  %1092 = vmatprep.subr.mxu0 0.0
  %1093 = vmatpush1.msra.mxu0 0.0
  %1094 = vmatprep.subr.mxu0 0.0
  %1095 = vmatpush1.msra.mxu0 0.0
  %1096 = vmatprep.subr.mxu0 0.0
  %1097 = vmatpush1.msra.mxu0 0.0
  %1098 = vmatprep.subr.mxu0 0.0
  %1099 = vmatpush1.msra.mxu0 0.0
  %1100 = vmatprep.subr.mxu0 0.0
  %1101 = vmatpush1.msra.mxu0 0.0
  %1102 = vmatprep.subr.mxu0 0.0
  %1103 = vmatpush1.msra.mxu0 0.0
  %1104 = vmatprep.subr.mxu0 0.0
  %1105 = vmatpush1.msra.mxu0 0.0
  %1106 = vmatprep.subr.mxu0 0.0
  %1107 = vmatpush1.msra.mxu0 0.0
  %1108 = vmatprep.subr.mxu0 0.0
  %1109 = vmatpush1.msra.mxu0 0.0
  %1110 = vmatprep.subr.mxu0 0.0
  %1111 = vmatpush1.msra.mxu0 0.0
  %1112 = vmatprep.subr.mxu0 0.0
  %1113 = vmatpush1.msra.mxu0 0.0
  %1114 = vmatprep.subr.mxu0 0.0
  %1115 = vmatpush1.msra.mxu0 0.0
  %1116 = vmatprep.subr.mxu0 0.0
  %1117 = vmatpush1.msra.mxu0 0.0
  %1118 = vmatprep.mubr.f32.mxu0 0.0
  %v1119 = vand.u32 %v675, 4294901760
  %v1120 = vsub.f32 %v675, %v1119
  %v1121 = vand.u32 %v1120, 4294901760
  %1122 = vmatmul.mubr.f32.gmra.mrb[0].mxu0 %v1121
  %v1123 = vpop.f32.mrb[0].mxu0
  %v1124 = vadd.f32 %v1035, %v1123
  %v1125 = vpop.f32.mrb[0].mxu0
  %1126 = vdwg.mxu0
  %1127 = vmatprep.subr.mxu0 0.0
  %v1128 = vand.u32 %v676, 4294901760
  %v1129 = vsub.f32 %v676, %v1128
  %v1130 = vand.u32 %v1129, 4294901760
  %1131 = vmatpush1.msra.mxu0 %v1130
  %1132 = vmatprep.subr.mxu0 0.0
  %v1133 = vand.u32 %v677, 4294901760
  %v1134 = vsub.f32 %v677, %v1133
  %v1135 = vand.u32 %v1134, 4294901760
  %1136 = vmatpush1.msra.mxu0 %v1135
  %1137 = vmatprep.subr.mxu0 0.0
  %v1138 = vand.u32 %v678, 4294901760
  %v1139 = vsub.f32 %v678, %v1138
  %v1140 = vand.u32 %v1139, 4294901760
  %1141 = vmatpush1.msra.mxu0 %v1140
  %1142 = vmatprep.subr.mxu0 0.0
  %v1143 = vand.u32 %v679, 4294901760
  %v1144 = vsub.f32 %v679, %v1143
  %v1145 = vand.u32 %v1144, 4294901760
  %1146 = vmatpush1.msra.mxu0 %v1145
  %1147 = vmatprep.subr.mxu0 0.0
  %v1148 = vand.u32 %v680, 4294901760
  %v1149 = vsub.f32 %v680, %v1148
  %v1150 = vand.u32 %v1149, 4294901760
  %1151 = vmatpush1.msra.mxu0 %v1150
  %1152 = vmatprep.subr.mxu0 0.0
  %v1153 = vand.u32 %v681, 4294901760
  %v1154 = vsub.f32 %v681, %v1153
  %v1155 = vand.u32 %v1154, 4294901760
  %1156 = vmatpush1.msra.mxu0 %v1155
  %1157 = vmatprep.subr.mxu0 0.0
  %v1158 = vand.u32 %v682, 4294901760
  %v1159 = vsub.f32 %v682, %v1158
  %v1160 = vand.u32 %v1159, 4294901760
  %1161 = vmatpush1.msra.mxu0 %v1160
  %1162 = vmatprep.subr.mxu0 0.0
  %v1163 = vand.u32 %v683, 4294901760
  %v1164 = vsub.f32 %v683, %v1163
  %v1165 = vand.u32 %v1164, 4294901760
  %1166 = vmatpush1.msra.mxu0 %v1165
  %1167 = vmatprep.subr.mxu0 0.0
  %v1168 = vand.u32 %v684, 4294901760
  %v1169 = vsub.f32 %v684, %v1168
  %v1170 = vand.u32 %v1169, 4294901760
  %1171 = vmatpush1.msra.mxu0 %v1170
  %1172 = vmatprep.subr.mxu0 0.0
  %v1173 = vand.u32 %v685, 4294901760
  %v1174 = vsub.f32 %v685, %v1173
  %v1175 = vand.u32 %v1174, 4294901760
  %1176 = vmatpush1.msra.mxu0 %v1175
  %1177 = vmatprep.subr.mxu0 0.0
  %v1178 = vand.u32 %v686, 4294901760
  %v1179 = vsub.f32 %v686, %v1178
  %v1180 = vand.u32 %v1179, 4294901760
  %1181 = vmatpush1.msra.mxu0 %v1180
  %1182 = vmatprep.subr.mxu0 0.0
  %v1183 = vand.u32 %v687, 4294901760
  %v1184 = vsub.f32 %v687, %v1183
  %v1185 = vand.u32 %v1184, 4294901760
  %1186 = vmatpush1.msra.mxu0 %v1185
  %1187 = vmatprep.subr.mxu0 0.0
  %v1188 = vand.u32 %v688, 4294901760
  %v1189 = vsub.f32 %v688, %v1188
  %v1190 = vand.u32 %v1189, 4294901760
  %1191 = vmatpush1.msra.mxu0 %v1190
  %1192 = vmatprep.subr.mxu0 0.0
  %v1193 = vand.u32 %v689, 4294901760
  %v1194 = vsub.f32 %v689, %v1193
  %v1195 = vand.u32 %v1194, 4294901760
  %1196 = vmatpush1.msra.mxu0 %v1195
  %1197 = vmatprep.subr.mxu0 0.0
  %v1198 = vand.u32 %v690, 4294901760
  %v1199 = vsub.f32 %v690, %v1198
  %v1200 = vand.u32 %v1199, 4294901760
  %1201 = vmatpush1.msra.mxu0 %v1200
  %1202 = vmatprep.subr.mxu0 0.0
  %v1203 = vand.u32 %v691, 4294901760
  %v1204 = vsub.f32 %v691, %v1203
  %v1205 = vand.u32 %v1204, 4294901760
  %1206 = vmatpush1.msra.mxu0 %v1205
  %1207 = vmatprep.subr.mxu0 0.0
  %1208 = vmatpush1.msra.mxu0 0.0
  %1209 = vmatprep.subr.mxu0 0.0
  %1210 = vmatpush1.msra.mxu0 0.0
  %1211 = vmatprep.subr.mxu0 0.0
  %1212 = vmatpush1.msra.mxu0 0.0
  %1213 = vmatprep.subr.mxu0 0.0
  %1214 = vmatpush1.msra.mxu0 0.0
  %1215 = vmatprep.subr.mxu0 0.0
  %1216 = vmatpush1.msra.mxu0 0.0
  %1217 = vmatprep.subr.mxu0 0.0
  %1218 = vmatpush1.msra.mxu0 0.0
  %1219 = vmatprep.subr.mxu0 0.0
  %1220 = vmatpush1.msra.mxu0 0.0
  %1221 = vmatprep.subr.mxu0 0.0
  %1222 = vmatpush1.msra.mxu0 0.0
  %1223 = vmatprep.subr.mxu0 0.0
  %1224 = vmatpush1.msra.mxu0 0.0
  %1225 = vmatprep.subr.mxu0 0.0
  %1226 = vmatpush1.msra.mxu0 0.0
  %1227 = vmatprep.subr.mxu0 0.0
  %1228 = vmatpush1.msra.mxu0 0.0
  %1229 = vmatprep.subr.mxu0 0.0
  %1230 = vmatpush1.msra.mxu0 0.0
  %1231 = vmatprep.subr.mxu0 0.0
  %1232 = vmatpush1.msra.mxu0 0.0
  %1233 = vmatprep.subr.mxu0 0.0
  %1234 = vmatpush1.msra.mxu0 0.0
  %1235 = vmatprep.subr.mxu0 0.0
  %1236 = vmatpush1.msra.mxu0 0.0
  %1237 = vmatprep.subr.mxu0 0.0
  %1238 = vmatpush1.msra.mxu0 0.0
  %1239 = vmatprep.mubr.f32.mxu0 0.0
  %v1240 = vand.u32 %v675, 4294901760
  %1241 = vmatmul.mubr.f32.gmra.mrb[0].mxu0 %v1240
  %v1242 = vpop.f32.mrb[0].mxu0
  %v1243 = vadd.f32 %v1124, %v1242
  %v1244 = vpop.f32.mrb[0].mxu0
  %1245 = vdwg.mxu0
  %1246 = vmatprep.subr.mxu0 0.0
  %v1247 = vand.u32 %v676, 4294901760
  %1248 = vmatpush1.msra.mxu0 %v1247
  %1249 = vmatprep.subr.mxu0 0.0
  %v1250 = vand.u32 %v677, 4294901760
  %1251 = vmatpush1.msra.mxu0 %v1250
  %1252 = vmatprep.subr.mxu0 0.0
  %v1253 = vand.u32 %v678, 4294901760
  %1254 = vmatpush1.msra.mxu0 %v1253
  %1255 = vmatprep.subr.mxu0 0.0
  %v1256 = vand.u32 %v679, 4294901760
  %1257 = vmatpush1.msra.mxu0 %v1256
  %1258 = vmatprep.subr.mxu0 0.0
  %v1259 = vand.u32 %v680, 4294901760
  %1260 = vmatpush1.msra.mxu0 %v1259
  %1261 = vmatprep.subr.mxu0 0.0
  %v1262 = vand.u32 %v681, 4294901760
  %1263 = vmatpush1.msra.mxu0 %v1262
  %1264 = vmatprep.subr.mxu0 0.0
  %v1265 = vand.u32 %v682, 4294901760
  %1266 = vmatpush1.msra.mxu0 %v1265
  %1267 = vmatprep.subr.mxu0 0.0
  %v1268 = vand.u32 %v683, 4294901760
  %1269 = vmatpush1.msra.mxu0 %v1268
  %1270 = vmatprep.subr.mxu0 0.0
  %v1271 = vand.u32 %v684, 4294901760
  %1272 = vmatpush1.msra.mxu0 %v1271
  %1273 = vmatprep.subr.mxu0 0.0
  %v1274 = vand.u32 %v685, 4294901760
  %1275 = vmatpush1.msra.mxu0 %v1274
  %1276 = vmatprep.subr.mxu0 0.0
  %v1277 = vand.u32 %v686, 4294901760
  %1278 = vmatpush1.msra.mxu0 %v1277
  %1279 = vmatprep.subr.mxu0 0.0
  %v1280 = vand.u32 %v687, 4294901760
  %1281 = vmatpush1.msra.mxu0 %v1280
  %1282 = vmatprep.subr.mxu0 0.0
  %v1283 = vand.u32 %v688, 4294901760
  %1284 = vmatpush1.msra.mxu0 %v1283
  %1285 = vmatprep.subr.mxu0 0.0
  %v1286 = vand.u32 %v689, 4294901760
  %1287 = vmatpush1.msra.mxu0 %v1286
  %1288 = vmatprep.subr.mxu0 0.0
  %v1289 = vand.u32 %v690, 4294901760
  %1290 = vmatpush1.msra.mxu0 %v1289
  %1291 = vmatprep.subr.mxu0 0.0
  %v1292 = vand.u32 %v691, 4294901760
  %1293 = vmatpush1.msra.mxu0 %v1292
  %1294 = vmatprep.subr.mxu0 0.0
  %1295 = vmatpush1.msra.mxu0 0.0
  %1296 = vmatprep.subr.mxu0 0.0
  %1297 = vmatpush1.msra.mxu0 0.0
  %1298 = vmatprep.subr.mxu0 0.0
  %1299 = vmatpush1.msra.mxu0 0.0
  %1300 = vmatprep.subr.mxu0 0.0
  %1301 = vmatpush1.msra.mxu0 0.0
  %1302 = vmatprep.subr.mxu0 0.0
  %1303 = vmatpush1.msra.mxu0 0.0
  %1304 = vmatprep.subr.mxu0 0.0
  %1305 = vmatpush1.msra.mxu0 0.0
  %1306 = vmatprep.subr.mxu0 0.0
  %1307 = vmatpush1.msra.mxu0 0.0
  %1308 = vmatprep.subr.mxu0 0.0
  %1309 = vmatpush1.msra.mxu0 0.0
  %1310 = vmatprep.subr.mxu0 0.0
  %1311 = vmatpush1.msra.mxu0 0.0
  %1312 = vmatprep.subr.mxu0 0.0
  %1313 = vmatpush1.msra.mxu0 0.0
  %1314 = vmatprep.subr.mxu0 0.0
  %1315 = vmatpush1.msra.mxu0 0.0
  %1316 = vmatprep.subr.mxu0 0.0
  %1317 = vmatpush1.msra.mxu0 0.0
  %1318 = vmatprep.subr.mxu0 0.0
  %1319 = vmatpush1.msra.mxu0 0.0
  %1320 = vmatprep.subr.mxu0 0.0
  %1321 = vmatpush1.msra.mxu0 0.0
  %1322 = vmatprep.subr.mxu0 0.0
  %1323 = vmatpush1.msra.mxu0 0.0
  %1324 = vmatprep.subr.mxu0 0.0
  %1325 = vmatpush1.msra.mxu0 0.0
  %1326 = vmatprep.mubr.f32.mxu0 0.0
  %v1327 = vand.u32 %v675, 4294901760
  %1328 = vmatmul.mubr.f32.gmra.mrb[0].mxu0 %v1327
  %v1329 = vpop.f32.mrb[0].mxu0
  %v1330 = vadd.f32 %v1243, %v1329
  %v1331 = vpop.f32.mrb[0].mxu0
  %1332 = vdwg.mxu0
  %v1333 = vtanh.pop %v1330
  %v1334 = vld [vmem:[%s3] sm:$0xff]
  %v1335 = vld [vmem:[%s3 + $0x8] sm:$0xff]
  %v1336 = vld [vmem:[%s3 + $0x10] sm:$0xff]
  %v1337 = vld [vmem:[%s3 + $0x18] sm:$0xff]
  %v1338 = vld [vmem:[%s3 + $0x20] sm:$0xff]
  %v1339 = vld [vmem:[%s3 + $0x28] sm:$0xff]
  %v1340 = vld [vmem:[%s3 + $0x30] sm:$0xff]
  %v1341 = vld [vmem:[%s3 + $0x38] sm:$0xff]
  %v1342 = vld [vmem:[%s3 + $0x40] sm:$0xff]
  %v1343 = vld [vmem:[%s3 + $0x48] sm:$0xff]
  %v1344 = vld [vmem:[%s3 + $0x50] sm:$0xff]
  %v1345 = vld [vmem:[%s3 + $0x58] sm:$0xff]
  %v1346 = vld [vmem:[%s3 + $0x60] sm:$0xff]
  %v1347 = vld [vmem:[%s3 + $0x68] sm:$0xff]
  %v1348 = vld [vmem:[%s3 + $0x70] sm:$0xff]
  %v1349 = vld [vmem:[%s3 + $0x78] sm:$0xff]
  %1350 = vmatprep.subr.mxu0 0.0
  %v1351 = vand.u32 %v1334, 4294901760
  %1352 = vmatpush1.msra.mxu0 %v1351
  %1353 = vmatprep.subr.mxu0 0.0
  %v1354 = vand.u32 %v1335, 4294901760
  %1355 = vmatpush1.msra.mxu0 %v1354
  %1356 = vmatprep.subr.mxu0 0.0
  %v1357 = vand.u32 %v1336, 4294901760
  %1358 = vmatpush1.msra.mxu0 %v1357
  %1359 = vmatprep.subr.mxu0 0.0
  %v1360 = vand.u32 %v1337, 4294901760
  %1361 = vmatpush1.msra.mxu0 %v1360
  %1362 = vmatprep.subr.mxu0 0.0
  %v1363 = vand.u32 %v1338, 4294901760
  %1364 = vmatpush1.msra.mxu0 %v1363
  %1365 = vmatprep.subr.mxu0 0.0
  %v1366 = vand.u32 %v1339, 4294901760
  %1367 = vmatpush1.msra.mxu0 %v1366
  %1368 = vmatprep.subr.mxu0 0.0
  %v1369 = vand.u32 %v1340, 4294901760
  %1370 = vmatpush1.msra.mxu0 %v1369
  %1371 = vmatprep.subr.mxu0 0.0
  %v1372 = vand.u32 %v1341, 4294901760
  %1373 = vmatpush1.msra.mxu0 %v1372
  %1374 = vmatprep.subr.mxu0 0.0
  %v1375 = vand.u32 %v1342, 4294901760
  %1376 = vmatpush1.msra.mxu0 %v1375
  %1377 = vmatprep.subr.mxu0 0.0
  %v1378 = vand.u32 %v1343, 4294901760
  %1379 = vmatpush1.msra.mxu0 %v1378
  %1380 = vmatprep.subr.mxu0 0.0
  %v1381 = vand.u32 %v1344, 4294901760
  %1382 = vmatpush1.msra.mxu0 %v1381
  %1383 = vmatprep.subr.mxu0 0.0
  %v1384 = vand.u32 %v1345, 4294901760
  %1385 = vmatpush1.msra.mxu0 %v1384
  %1386 = vmatprep.subr.mxu0 0.0
  %v1387 = vand.u32 %v1346, 4294901760
  %1388 = vmatpush1.msra.mxu0 %v1387
  %1389 = vmatprep.subr.mxu0 0.0
  %v1390 = vand.u32 %v1347, 4294901760
  %1391 = vmatpush1.msra.mxu0 %v1390
  %1392 = vmatprep.subr.mxu0 0.0
  %v1393 = vand.u32 %v1348, 4294901760
  %1394 = vmatpush1.msra.mxu0 %v1393
  %1395 = vmatprep.subr.mxu0 0.0
  %v1396 = vand.u32 %v1349, 4294901760
  %1397 = vmatpush1.msra.mxu0 %v1396
  %1398 = vmatprep.subr.mxu0 0.0
  %1399 = vmatpush1.msra.mxu0 0.0
  %1400 = vmatprep.subr.mxu0 0.0
  %1401 = vmatpush1.msra.mxu0 0.0
  %1402 = vmatprep.subr.mxu0 0.0
  %1403 = vmatpush1.msra.mxu0 0.0
  %1404 = vmatprep.subr.mxu0 0.0
  %1405 = vmatpush1.msra.mxu0 0.0
  %1406 = vmatprep.subr.mxu0 0.0
  %1407 = vmatpush1.msra.mxu0 0.0
  %1408 = vmatprep.subr.mxu0 0.0
  %1409 = vmatpush1.msra.mxu0 0.0
  %1410 = vmatprep.subr.mxu0 0.0
  %1411 = vmatpush1.msra.mxu0 0.0
  %1412 = vmatprep.subr.mxu0 0.0
  %1413 = vmatpush1.msra.mxu0 0.0
  %1414 = vmatprep.subr.mxu0 0.0
  %1415 = vmatpush1.msra.mxu0 0.0
  %1416 = vmatprep.subr.mxu0 0.0
  %1417 = vmatpush1.msra.mxu0 0.0
  %1418 = vmatprep.subr.mxu0 0.0
  %1419 = vmatpush1.msra.mxu0 0.0
  %1420 = vmatprep.subr.mxu0 0.0
  %1421 = vmatpush1.msra.mxu0 0.0
  %1422 = vmatprep.subr.mxu0 0.0
  %1423 = vmatpush1.msra.mxu0 0.0
  %1424 = vmatprep.subr.mxu0 0.0
  %1425 = vmatpush1.msra.mxu0 0.0
  %1426 = vmatprep.subr.mxu0 0.0
  %1427 = vmatpush1.msra.mxu0 0.0
  %1428 = vmatprep.subr.mxu0 0.0
  %1429 = vmatpush1.msra.mxu0 0.0
  %1430 = vmatprep.mubr.f32.mxu0 0.0
  %v1431 = vand.u32 %v1333, 4294901760
  %v1432 = vsub.f32 %v1333, %v1431
  %v1433 = vand.u32 %v1432, 4294901760
  %v1434 = vsub.f32 %v1432, %v1433
  %v1435 = vand.u32 %v1434, 4294901760
  %1436 = vmatmul.mubr.f32.gmra.mrb[0].mxu0 %v1435
  %v1437 = vpop.f32.mrb[0].mxu0
  %v1438 = vadd.f32 0.0, %v1437
  %v1439 = vpop.f32.mrb[0].mxu0
  %1440 = vdwg.mxu0
  %1441 = vmatprep.subr.mxu0 0.0
  %v1442 = vand.u32 %v1334, 4294901760
  %v1443 = vsub.f32 %v1334, %v1442
  %v1444 = vand.u32 %v1443, 4294901760
  %v1445 = vsub.f32 %v1443, %v1444
  %v1446 = vand.u32 %v1445, 4294901760
  %1447 = vmatpush1.msra.mxu0 %v1446
  %1448 = vmatprep.subr.mxu0 0.0
  %v1449 = vand.u32 %v1335, 4294901760
  %v1450 = vsub.f32 %v1335, %v1449
  %v1451 = vand.u32 %v1450, 4294901760
  %v1452 = vsub.f32 %v1450, %v1451
  %v1453 = vand.u32 %v1452, 4294901760
  %1454 = vmatpush1.msra.mxu0 %v1453
  %1455 = vmatprep.subr.mxu0 0.0
  %v1456 = vand.u32 %v1336, 4294901760
  %v1457 = vsub.f32 %v1336, %v1456
  %v1458 = vand.u32 %v1457, 4294901760
  %v1459 = vsub.f32 %v1457, %v1458
  %v1460 = vand.u32 %v1459, 4294901760
  %1461 = vmatpush1.msra.mxu0 %v1460
  %1462 = vmatprep.subr.mxu0 0.0
  %v1463 = vand.u32 %v1337, 4294901760
  %v1464 = vsub.f32 %v1337, %v1463
  %v1465 = vand.u32 %v1464, 4294901760
  %v1466 = vsub.f32 %v1464, %v1465
  %v1467 = vand.u32 %v1466, 4294901760
  %1468 = vmatpush1.msra.mxu0 %v1467
  %1469 = vmatprep.subr.mxu0 0.0
  %v1470 = vand.u32 %v1338, 4294901760
  %v1471 = vsub.f32 %v1338, %v1470
  %v1472 = vand.u32 %v1471, 4294901760
  %v1473 = vsub.f32 %v1471, %v1472
  %v1474 = vand.u32 %v1473, 4294901760
  %1475 = vmatpush1.msra.mxu0 %v1474
  %1476 = vmatprep.subr.mxu0 0.0
  %v1477 = vand.u32 %v1339, 4294901760
  %v1478 = vsub.f32 %v1339, %v1477
  %v1479 = vand.u32 %v1478, 4294901760
  %v1480 = vsub.f32 %v1478, %v1479
  %v1481 = vand.u32 %v1480, 4294901760
  %1482 = vmatpush1.msra.mxu0 %v1481
  %1483 = vmatprep.subr.mxu0 0.0
  %v1484 = vand.u32 %v1340, 4294901760
  %v1485 = vsub.f32 %v1340, %v1484
  %v1486 = vand.u32 %v1485, 4294901760
  %v1487 = vsub.f32 %v1485, %v1486
  %v1488 = vand.u32 %v1487, 4294901760
  %1489 = vmatpush1.msra.mxu0 %v1488
  %1490 = vmatprep.subr.mxu0 0.0
  %v1491 = vand.u32 %v1341, 4294901760
  %v1492 = vsub.f32 %v1341, %v1491
  %v1493 = vand.u32 %v1492, 4294901760
  %v1494 = vsub.f32 %v1492, %v1493
  %v1495 = vand.u32 %v1494, 4294901760
  %1496 = vmatpush1.msra.mxu0 %v1495
  %1497 = vmatprep.subr.mxu0 0.0
  %v1498 = vand.u32 %v1342, 4294901760
  %v1499 = vsub.f32 %v1342, %v1498
  %v1500 = vand.u32 %v1499, 4294901760
  %v1501 = vsub.f32 %v1499, %v1500
  %v1502 = vand.u32 %v1501, 4294901760
  %1503 = vmatpush1.msra.mxu0 %v1502
  %1504 = vmatprep.subr.mxu0 0.0
  %v1505 = vand.u32 %v1343, 4294901760
  %v1506 = vsub.f32 %v1343, %v1505
  %v1507 = vand.u32 %v1506, 4294901760
  %v1508 = vsub.f32 %v1506, %v1507
  %v1509 = vand.u32 %v1508, 4294901760
  %1510 = vmatpush1.msra.mxu0 %v1509
  %1511 = vmatprep.subr.mxu0 0.0
  %v1512 = vand.u32 %v1344, 4294901760
  %v1513 = vsub.f32 %v1344, %v1512
  %v1514 = vand.u32 %v1513, 4294901760
  %v1515 = vsub.f32 %v1513, %v1514
  %v1516 = vand.u32 %v1515, 4294901760
  %1517 = vmatpush1.msra.mxu0 %v1516
  %1518 = vmatprep.subr.mxu0 0.0
  %v1519 = vand.u32 %v1345, 4294901760
  %v1520 = vsub.f32 %v1345, %v1519
  %v1521 = vand.u32 %v1520, 4294901760
  %v1522 = vsub.f32 %v1520, %v1521
  %v1523 = vand.u32 %v1522, 4294901760
  %1524 = vmatpush1.msra.mxu0 %v1523
  %1525 = vmatprep.subr.mxu0 0.0
  %v1526 = vand.u32 %v1346, 4294901760
  %v1527 = vsub.f32 %v1346, %v1526
  %v1528 = vand.u32 %v1527, 4294901760
  %v1529 = vsub.f32 %v1527, %v1528
  %v1530 = vand.u32 %v1529, 4294901760
  %1531 = vmatpush1.msra.mxu0 %v1530
  %1532 = vmatprep.subr.mxu0 0.0
  %v1533 = vand.u32 %v1347, 4294901760
  %v1534 = vsub.f32 %v1347, %v1533
  %v1535 = vand.u32 %v1534, 4294901760
  %v1536 = vsub.f32 %v1534, %v1535
  %v1537 = vand.u32 %v1536, 4294901760
  %1538 = vmatpush1.msra.mxu0 %v1537
  %1539 = vmatprep.subr.mxu0 0.0
  %v1540 = vand.u32 %v1348, 4294901760
  %v1541 = vsub.f32 %v1348, %v1540
  %v1542 = vand.u32 %v1541, 4294901760
  %v1543 = vsub.f32 %v1541, %v1542
  %v1544 = vand.u32 %v1543, 4294901760
  %1545 = vmatpush1.msra.mxu0 %v1544
  %1546 = vmatprep.subr.mxu0 0.0
  %v1547 = vand.u32 %v1349, 4294901760
  %v1548 = vsub.f32 %v1349, %v1547
  %v1549 = vand.u32 %v1548, 4294901760
  %v1550 = vsub.f32 %v1548, %v1549
  %v1551 = vand.u32 %v1550, 4294901760
  %1552 = vmatpush1.msra.mxu0 %v1551
  %1553 = vmatprep.subr.mxu0 0.0
  %1554 = vmatpush1.msra.mxu0 0.0
  %1555 = vmatprep.subr.mxu0 0.0
  %1556 = vmatpush1.msra.mxu0 0.0
  %1557 = vmatprep.subr.mxu0 0.0
  %1558 = vmatpush1.msra.mxu0 0.0
  %1559 = vmatprep.subr.mxu0 0.0
  %1560 = vmatpush1.msra.mxu0 0.0
  %1561 = vmatprep.subr.mxu0 0.0
  %1562 = vmatpush1.msra.mxu0 0.0
  %1563 = vmatprep.subr.mxu0 0.0
  %1564 = vmatpush1.msra.mxu0 0.0
  %1565 = vmatprep.subr.mxu0 0.0
  %1566 = vmatpush1.msra.mxu0 0.0
  %1567 = vmatprep.subr.mxu0 0.0
  %1568 = vmatpush1.msra.mxu0 0.0
  %1569 = vmatprep.subr.mxu0 0.0
  %1570 = vmatpush1.msra.mxu0 0.0
  %1571 = vmatprep.subr.mxu0 0.0
  %1572 = vmatpush1.msra.mxu0 0.0
  %1573 = vmatprep.subr.mxu0 0.0
  %1574 = vmatpush1.msra.mxu0 0.0
  %1575 = vmatprep.subr.mxu0 0.0
  %1576 = vmatpush1.msra.mxu0 0.0
  %1577 = vmatprep.subr.mxu0 0.0
  %1578 = vmatpush1.msra.mxu0 0.0
  %1579 = vmatprep.subr.mxu0 0.0
  %1580 = vmatpush1.msra.mxu0 0.0
  %1581 = vmatprep.subr.mxu0 0.0
  %1582 = vmatpush1.msra.mxu0 0.0
  %1583 = vmatprep.subr.mxu0 0.0
  %1584 = vmatpush1.msra.mxu0 0.0
  %1585 = vmatprep.mubr.f32.mxu0 0.0
  %v1586 = vand.u32 %v1333, 4294901760
  %1587 = vmatmul.mubr.f32.gmra.mrb[0].mxu0 %v1586
  %v1588 = vpop.f32.mrb[0].mxu0
  %v1589 = vadd.f32 %v1438, %v1588
  %v1590 = vpop.f32.mrb[0].mxu0
  %1591 = vdwg.mxu0
  %1592 = vmatprep.subr.mxu0 0.0
  %v1593 = vand.u32 %v1334, 4294901760
  %v1594 = vsub.f32 %v1334, %v1593
  %1595 = vmatpush1.msra.mxu0 %v1594
  %1596 = vmatprep.subr.mxu0 0.0
  %v1597 = vand.u32 %v1335, 4294901760
  %v1598 = vsub.f32 %v1335, %v1597
  %1599 = vmatpush1.msra.mxu0 %v1598
  %1600 = vmatprep.subr.mxu0 0.0
  %v1601 = vand.u32 %v1336, 4294901760
  %v1602 = vsub.f32 %v1336, %v1601
  %1603 = vmatpush1.msra.mxu0 %v1602
  %1604 = vmatprep.subr.mxu0 0.0
  %v1605 = vand.u32 %v1337, 4294901760
  %v1606 = vsub.f32 %v1337, %v1605
  %1607 = vmatpush1.msra.mxu0 %v1606
  %1608 = vmatprep.subr.mxu0 0.0
  %v1609 = vand.u32 %v1338, 4294901760
  %v1610 = vsub.f32 %v1338, %v1609
  %1611 = vmatpush1.msra.mxu0 %v1610
  %1612 = vmatprep.subr.mxu0 0.0
  %v1613 = vand.u32 %v1339, 4294901760
  %v1614 = vsub.f32 %v1339, %v1613
  %1615 = vmatpush1.msra.mxu0 %v1614
  %1616 = vmatprep.subr.mxu0 0.0
  %v1617 = vand.u32 %v1340, 4294901760
  %v1618 = vsub.f32 %v1340, %v1617
  %1619 = vmatpush1.msra.mxu0 %v1618
  %1620 = vmatprep.subr.mxu0 0.0
  %v1621 = vand.u32 %v1341, 4294901760
  %v1622 = vsub.f32 %v1341, %v1621
  %1623 = vmatpush1.msra.mxu0 %v1622
  %1624 = vmatprep.subr.mxu0 0.0
  %v1625 = vand.u32 %v1342, 4294901760
  %v1626 = vsub.f32 %v1342, %v1625
  %1627 = vmatpush1.msra.mxu0 %v1626
  %1628 = vmatprep.subr.mxu0 0.0
  %v1629 = vand.u32 %v1343, 4294901760
  %v1630 = vsub.f32 %v1343, %v1629
  %1631 = vmatpush1.msra.mxu0 %v1630
  %1632 = vmatprep.subr.mxu0 0.0
  %v1633 = vand.u32 %v1344, 4294901760
  %v1634 = vsub.f32 %v1344, %v1633
  %1635 = vmatpush1.msra.mxu0 %v1634
  %1636 = vmatprep.subr.mxu0 0.0
  %v1637 = vand.u32 %v1345, 4294901760
  %v1638 = vsub.f32 %v1345, %v1637
  %1639 = vmatpush1.msra.mxu0 %v1638
  %1640 = vmatprep.subr.mxu0 0.0
  %v1641 = vand.u32 %v1346, 4294901760
  %v1642 = vsub.f32 %v1346, %v1641
  %1643 = vmatpush1.msra.mxu0 %v1642
  %1644 = vmatprep.subr.mxu0 0.0
  %v1645 = vand.u32 %v1347, 4294901760
  %v1646 = vsub.f32 %v1347, %v1645
  %1647 = vmatpush1.msra.mxu0 %v1646
  %1648 = vmatprep.subr.mxu0 0.0
  %v1649 = vand.u32 %v1348, 4294901760
  %v1650 = vsub.f32 %v1348, %v1649
  %1651 = vmatpush1.msra.mxu0 %v1650
  %1652 = vmatprep.subr.mxu0 0.0
  %v1653 = vand.u32 %v1349, 4294901760
  %v1654 = vsub.f32 %v1349, %v1653
  %1655 = vmatpush1.msra.mxu0 %v1654
  %1656 = vmatprep.subr.mxu0 0.0
  %1657 = vmatpush1.msra.mxu0 0.0
  %1658 = vmatprep.subr.mxu0 0.0
  %1659 = vmatpush1.msra.mxu0 0.0
  %1660 = vmatprep.subr.mxu0 0.0
  %1661 = vmatpush1.msra.mxu0 0.0
  %1662 = vmatprep.subr.mxu0 0.0
  %1663 = vmatpush1.msra.mxu0 0.0
  %1664 = vmatprep.subr.mxu0 0.0
  %1665 = vmatpush1.msra.mxu0 0.0
  %1666 = vmatprep.subr.mxu0 0.0
  %1667 = vmatpush1.msra.mxu0 0.0
  %1668 = vmatprep.subr.mxu0 0.0
  %1669 = vmatpush1.msra.mxu0 0.0
  %1670 = vmatprep.subr.mxu0 0.0
  %1671 = vmatpush1.msra.mxu0 0.0
  %1672 = vmatprep.subr.mxu0 0.0
  %1673 = vmatpush1.msra.mxu0 0.0
  %1674 = vmatprep.subr.mxu0 0.0
  %1675 = vmatpush1.msra.mxu0 0.0
  %1676 = vmatprep.subr.mxu0 0.0
  %1677 = vmatpush1.msra.mxu0 0.0
  %1678 = vmatprep.subr.mxu0 0.0
  %1679 = vmatpush1.msra.mxu0 0.0
  %1680 = vmatprep.subr.mxu0 0.0
  %1681 = vmatpush1.msra.mxu0 0.0
  %1682 = vmatprep.subr.mxu0 0.0
  %1683 = vmatpush1.msra.mxu0 0.0
  %1684 = vmatprep.subr.mxu0 0.0
  %1685 = vmatpush1.msra.mxu0 0.0
  %1686 = vmatprep.subr.mxu0 0.0
  %1687 = vmatpush1.msra.mxu0 0.0
  %1688 = vmatprep.mubr.f32.mxu0 0.0
  %v1689 = vand.u32 %v1333, 4294901760
  %v1690 = vsub.f32 %v1333, %v1689
  %1691 = vmatmul.mubr.f32.gmra.mrb[0].mxu0 %v1690
  %v1692 = vpop.f32.mrb[0].mxu0
  %v1693 = vadd.f32 %v1589, %v1692
  %v1694 = vpop.f32.mrb[0].mxu0
  %1695 = vdwg.mxu0
  %1696 = vmatprep.subr.mxu0 0.0
  %v1697 = vand.u32 %v1334, 4294901760
  %1698 = vmatpush1.msra.mxu0 %v1697
  %1699 = vmatprep.subr.mxu0 0.0
  %v1700 = vand.u32 %v1335, 4294901760
  %1701 = vmatpush1.msra.mxu0 %v1700
  %1702 = vmatprep.subr.mxu0 0.0
  %v1703 = vand.u32 %v1336, 4294901760
  %1704 = vmatpush1.msra.mxu0 %v1703
  %1705 = vmatprep.subr.mxu0 0.0
  %v1706 = vand.u32 %v1337, 4294901760
  %1707 = vmatpush1.msra.mxu0 %v1706
  %1708 = vmatprep.subr.mxu0 0.0
  %v1709 = vand.u32 %v1338, 4294901760
  %1710 = vmatpush1.msra.mxu0 %v1709
  %1711 = vmatprep.subr.mxu0 0.0
  %v1712 = vand.u32 %v1339, 4294901760
  %1713 = vmatpush1.msra.mxu0 %v1712
  %1714 = vmatprep.subr.mxu0 0.0
  %v1715 = vand.u32 %v1340, 4294901760
  %1716 = vmatpush1.msra.mxu0 %v1715
  %1717 = vmatprep.subr.mxu0 0.0
  %v1718 = vand.u32 %v1341, 4294901760
  %1719 = vmatpush1.msra.mxu0 %v1718
  %1720 = vmatprep.subr.mxu0 0.0
  %v1721 = vand.u32 %v1342, 4294901760
  %1722 = vmatpush1.msra.mxu0 %v1721
  %1723 = vmatprep.subr.mxu0 0.0
  %v1724 = vand.u32 %v1343, 4294901760
  %1725 = vmatpush1.msra.mxu0 %v1724
  %1726 = vmatprep.subr.mxu0 0.0
  %v1727 = vand.u32 %v1344, 4294901760
  %1728 = vmatpush1.msra.mxu0 %v1727
  %1729 = vmatprep.subr.mxu0 0.0
  %v1730 = vand.u32 %v1345, 4294901760
  %1731 = vmatpush1.msra.mxu0 %v1730
  %1732 = vmatprep.subr.mxu0 0.0
  %v1733 = vand.u32 %v1346, 4294901760
  %1734 = vmatpush1.msra.mxu0 %v1733
  %1735 = vmatprep.subr.mxu0 0.0
  %v1736 = vand.u32 %v1347, 4294901760
  %1737 = vmatpush1.msra.mxu0 %v1736
  %1738 = vmatprep.subr.mxu0 0.0
  %v1739 = vand.u32 %v1348, 4294901760
  %1740 = vmatpush1.msra.mxu0 %v1739
  %1741 = vmatprep.subr.mxu0 0.0
  %v1742 = vand.u32 %v1349, 4294901760
  %1743 = vmatpush1.msra.mxu0 %v1742
  %1744 = vmatprep.subr.mxu0 0.0
  %1745 = vmatpush1.msra.mxu0 0.0
  %1746 = vmatprep.subr.mxu0 0.0
  %1747 = vmatpush1.msra.mxu0 0.0
  %1748 = vmatprep.subr.mxu0 0.0
  %1749 = vmatpush1.msra.mxu0 0.0
  %1750 = vmatprep.subr.mxu0 0.0
  %1751 = vmatpush1.msra.mxu0 0.0
  %1752 = vmatprep.subr.mxu0 0.0
  %1753 = vmatpush1.msra.mxu0 0.0
  %1754 = vmatprep.subr.mxu0 0.0
  %1755 = vmatpush1.msra.mxu0 0.0
  %1756 = vmatprep.subr.mxu0 0.0
  %1757 = vmatpush1.msra.mxu0 0.0
  %1758 = vmatprep.subr.mxu0 0.0
  %1759 = vmatpush1.msra.mxu0 0.0
  %1760 = vmatprep.subr.mxu0 0.0
  %1761 = vmatpush1.msra.mxu0 0.0
  %1762 = vmatprep.subr.mxu0 0.0
  %1763 = vmatpush1.msra.mxu0 0.0
  %1764 = vmatprep.subr.mxu0 0.0
  %1765 = vmatpush1.msra.mxu0 0.0
  %1766 = vmatprep.subr.mxu0 0.0
  %1767 = vmatpush1.msra.mxu0 0.0
  %1768 = vmatprep.subr.mxu0 0.0
  %1769 = vmatpush1.msra.mxu0 0.0
  %1770 = vmatprep.subr.mxu0 0.0
  %1771 = vmatpush1.msra.mxu0 0.0
  %1772 = vmatprep.subr.mxu0 0.0
  %1773 = vmatpush1.msra.mxu0 0.0
  %1774 = vmatprep.subr.mxu0 0.0
  %1775 = vmatpush1.msra.mxu0 0.0
  %1776 = vmatprep.mubr.f32.mxu0 0.0
  %v1777 = vand.u32 %v1333, 4294901760
  %v1778 = vsub.f32 %v1333, %v1777
  %v1779 = vand.u32 %v1778, 4294901760
  %1780 = vmatmul.mubr.f32.gmra.mrb[0].mxu0 %v1779
  %v1781 = vpop.f32.mrb[0].mxu0
  %v1782 = vadd.f32 %v1693, %v1781
  %v1783 = vpop.f32.mrb[0].mxu0
  %1784 = vdwg.mxu0
  %1785 = vmatprep.subr.mxu0 0.0
  %v1786 = vand.u32 %v1334, 4294901760
  %v1787 = vsub.f32 %v1334, %v1786
  %v1788 = vand.u32 %v1787, 4294901760
  %1789 = vmatpush1.msra.mxu0 %v1788
  %1790 = vmatprep.subr.mxu0 0.0
  %v1791 = vand.u32 %v1335, 4294901760
  %v1792 = vsub.f32 %v1335, %v1791
  %v1793 = vand.u32 %v1792, 4294901760
  %1794 = vmatpush1.msra.mxu0 %v1793
  %1795 = vmatprep.subr.mxu0 0.0
  %v1796 = vand.u32 %v1336, 4294901760
  %v1797 = vsub.f32 %v1336, %v1796
  %v1798 = vand.u32 %v1797, 4294901760
  %1799 = vmatpush1.msra.mxu0 %v1798
  %1800 = vmatprep.subr.mxu0 0.0
  %v1801 = vand.u32 %v1337, 4294901760
  %v1802 = vsub.f32 %v1337, %v1801
  %v1803 = vand.u32 %v1802, 4294901760
  %1804 = vmatpush1.msra.mxu0 %v1803
  %1805 = vmatprep.subr.mxu0 0.0
  %v1806 = vand.u32 %v1338, 4294901760
  %v1807 = vsub.f32 %v1338, %v1806
  %v1808 = vand.u32 %v1807, 4294901760
  %1809 = vmatpush1.msra.mxu0 %v1808
  %1810 = vmatprep.subr.mxu0 0.0
  %v1811 = vand.u32 %v1339, 4294901760
  %v1812 = vsub.f32 %v1339, %v1811
  %v1813 = vand.u32 %v1812, 4294901760
  %1814 = vmatpush1.msra.mxu0 %v1813
  %1815 = vmatprep.subr.mxu0 0.0
  %v1816 = vand.u32 %v1340, 4294901760
  %v1817 = vsub.f32 %v1340, %v1816
  %v1818 = vand.u32 %v1817, 4294901760
  %1819 = vmatpush1.msra.mxu0 %v1818
  %1820 = vmatprep.subr.mxu0 0.0
  %v1821 = vand.u32 %v1341, 4294901760
  %v1822 = vsub.f32 %v1341, %v1821
  %v1823 = vand.u32 %v1822, 4294901760
  %1824 = vmatpush1.msra.mxu0 %v1823
  %1825 = vmatprep.subr.mxu0 0.0
  %v1826 = vand.u32 %v1342, 4294901760
  %v1827 = vsub.f32 %v1342, %v1826
  %v1828 = vand.u32 %v1827, 4294901760
  %1829 = vmatpush1.msra.mxu0 %v1828
  %1830 = vmatprep.subr.mxu0 0.0
  %v1831 = vand.u32 %v1343, 4294901760
  %v1832 = vsub.f32 %v1343, %v1831
  %v1833 = vand.u32 %v1832, 4294901760
  %1834 = vmatpush1.msra.mxu0 %v1833
  %1835 = vmatprep.subr.mxu0 0.0
  %v1836 = vand.u32 %v1344, 4294901760
  %v1837 = vsub.f32 %v1344, %v1836
  %v1838 = vand.u32 %v1837, 4294901760
  %1839 = vmatpush1.msra.mxu0 %v1838
  %1840 = vmatprep.subr.mxu0 0.0
  %v1841 = vand.u32 %v1345, 4294901760
  %v1842 = vsub.f32 %v1345, %v1841
  %v1843 = vand.u32 %v1842, 4294901760
  %1844 = vmatpush1.msra.mxu0 %v1843
  %1845 = vmatprep.subr.mxu0 0.0
  %v1846 = vand.u32 %v1346, 4294901760
  %v1847 = vsub.f32 %v1346, %v1846
  %v1848 = vand.u32 %v1847, 4294901760
  %1849 = vmatpush1.msra.mxu0 %v1848
  %1850 = vmatprep.subr.mxu0 0.0
  %v1851 = vand.u32 %v1347, 4294901760
  %v1852 = vsub.f32 %v1347, %v1851
  %v1853 = vand.u32 %v1852, 4294901760
  %1854 = vmatpush1.msra.mxu0 %v1853
  %1855 = vmatprep.subr.mxu0 0.0
  %v1856 = vand.u32 %v1348, 4294901760
  %v1857 = vsub.f32 %v1348, %v1856
  %v1858 = vand.u32 %v1857, 4294901760
  %1859 = vmatpush1.msra.mxu0 %v1858
  %1860 = vmatprep.subr.mxu0 0.0
  %v1861 = vand.u32 %v1349, 4294901760
  %v1862 = vsub.f32 %v1349, %v1861
  %v1863 = vand.u32 %v1862, 4294901760
  %1864 = vmatpush1.msra.mxu0 %v1863
  %1865 = vmatprep.subr.mxu0 0.0
  %1866 = vmatpush1.msra.mxu0 0.0
  %1867 = vmatprep.subr.mxu0 0.0
  %1868 = vmatpush1.msra.mxu0 0.0
  %1869 = vmatprep.subr.mxu0 0.0
  %1870 = vmatpush1.msra.mxu0 0.0
  %1871 = vmatprep.subr.mxu0 0.0
  %1872 = vmatpush1.msra.mxu0 0.0
  %1873 = vmatprep.subr.mxu0 0.0
  %1874 = vmatpush1.msra.mxu0 0.0
  %1875 = vmatprep.subr.mxu0 0.0
  %1876 = vmatpush1.msra.mxu0 0.0
  %1877 = vmatprep.subr.mxu0 0.0
  %1878 = vmatpush1.msra.mxu0 0.0
  %1879 = vmatprep.subr.mxu0 0.0
  %1880 = vmatpush1.msra.mxu0 0.0
  %1881 = vmatprep.subr.mxu0 0.0
  %1882 = vmatpush1.msra.mxu0 0.0
  %1883 = vmatprep.subr.mxu0 0.0
  %1884 = vmatpush1.msra.mxu0 0.0
  %1885 = vmatprep.subr.mxu0 0.0
  %1886 = vmatpush1.msra.mxu0 0.0
  %1887 = vmatprep.subr.mxu0 0.0
  %1888 = vmatpush1.msra.mxu0 0.0
  %1889 = vmatprep.subr.mxu0 0.0
  %1890 = vmatpush1.msra.mxu0 0.0
  %1891 = vmatprep.subr.mxu0 0.0
  %1892 = vmatpush1.msra.mxu0 0.0
  %1893 = vmatprep.subr.mxu0 0.0
  %1894 = vmatpush1.msra.mxu0 0.0
  %1895 = vmatprep.subr.mxu0 0.0
  %1896 = vmatpush1.msra.mxu0 0.0
  %1897 = vmatprep.mubr.f32.mxu0 0.0
  %v1898 = vand.u32 %v1333, 4294901760
  %1899 = vmatmul.mubr.f32.gmra.mrb[0].mxu0 %v1898
  %v1900 = vpop.f32.mrb[0].mxu0
  %v1901 = vadd.f32 %v1782, %v1900
  %v1902 = vpop.f32.mrb[0].mxu0
  %1903 = vdwg.mxu0
  %1904 = vmatprep.subr.mxu0 0.0
  %v1905 = vand.u32 %v1334, 4294901760
  %1906 = vmatpush1.msra.mxu0 %v1905
  %1907 = vmatprep.subr.mxu0 0.0
  %v1908 = vand.u32 %v1335, 4294901760
  %1909 = vmatpush1.msra.mxu0 %v1908
  %1910 = vmatprep.subr.mxu0 0.0
  %v1911 = vand.u32 %v1336, 4294901760
  %1912 = vmatpush1.msra.mxu0 %v1911
  %1913 = vmatprep.subr.mxu0 0.0
  %v1914 = vand.u32 %v1337, 4294901760
  %1915 = vmatpush1.msra.mxu0 %v1914
  %1916 = vmatprep.subr.mxu0 0.0
  %v1917 = vand.u32 %v1338, 4294901760
  %1918 = vmatpush1.msra.mxu0 %v1917
  %1919 = vmatprep.subr.mxu0 0.0
  %v1920 = vand.u32 %v1339, 4294901760
  %1921 = vmatpush1.msra.mxu0 %v1920
  %1922 = vmatprep.subr.mxu0 0.0
  %v1923 = vand.u32 %v1340, 4294901760
  %1924 = vmatpush1.msra.mxu0 %v1923
  %1925 = vmatprep.subr.mxu0 0.0
  %v1926 = vand.u32 %v1341, 4294901760
  %1927 = vmatpush1.msra.mxu0 %v1926
  %1928 = vmatprep.subr.mxu0 0.0
  %v1929 = vand.u32 %v1342, 4294901760
  %1930 = vmatpush1.msra.mxu0 %v1929
  %1931 = vmatprep.subr.mxu0 0.0
  %v1932 = vand.u32 %v1343, 4294901760
  %1933 = vmatpush1.msra.mxu0 %v1932
  %1934 = vmatprep.subr.mxu0 0.0
  %v1935 = vand.u32 %v1344, 4294901760
  %1936 = vmatpush1.msra.mxu0 %v1935
  %1937 = vmatprep.subr.mxu0 0.0
  %v1938 = vand.u32 %v1345, 4294901760
  %1939 = vmatpush1.msra.mxu0 %v1938
  %1940 = vmatprep.subr.mxu0 0.0
  %v1941 = vand.u32 %v1346, 4294901760
  %1942 = vmatpush1.msra.mxu0 %v1941
  %1943 = vmatprep.subr.mxu0 0.0
  %v1944 = vand.u32 %v1347, 4294901760
  %1945 = vmatpush1.msra.mxu0 %v1944
  %1946 = vmatprep.subr.mxu0 0.0
  %v1947 = vand.u32 %v1348, 4294901760
  %1948 = vmatpush1.msra.mxu0 %v1947
  %1949 = vmatprep.subr.mxu0 0.0
  %v1950 = vand.u32 %v1349, 4294901760
  %1951 = vmatpush1.msra.mxu0 %v1950
  %1952 = vmatprep.subr.mxu0 0.0
  %1953 = vmatpush1.msra.mxu0 0.0
  %1954 = vmatprep.subr.mxu0 0.0
  %1955 = vmatpush1.msra.mxu0 0.0
  %1956 = vmatprep.subr.mxu0 0.0
  %1957 = vmatpush1.msra.mxu0 0.0
  %1958 = vmatprep.subr.mxu0 0.0
  %1959 = vmatpush1.msra.mxu0 0.0
  %1960 = vmatprep.subr.mxu0 0.0
  %1961 = vmatpush1.msra.mxu0 0.0
  %1962 = vmatprep.subr.mxu0 0.0
  %1963 = vmatpush1.msra.mxu0 0.0
  %1964 = vmatprep.subr.mxu0 0.0
  %1965 = vmatpush1.msra.mxu0 0.0
  %1966 = vmatprep.subr.mxu0 0.0
  %1967 = vmatpush1.msra.mxu0 0.0
  %1968 = vmatprep.subr.mxu0 0.0
  %1969 = vmatpush1.msra.mxu0 0.0
  %1970 = vmatprep.subr.mxu0 0.0
  %1971 = vmatpush1.msra.mxu0 0.0
  %1972 = vmatprep.subr.mxu0 0.0
  %1973 = vmatpush1.msra.mxu0 0.0
  %1974 = vmatprep.subr.mxu0 0.0
  %1975 = vmatpush1.msra.mxu0 0.0
  %1976 = vmatprep.subr.mxu0 0.0
  %1977 = vmatpush1.msra.mxu0 0.0
  %1978 = vmatprep.subr.mxu0 0.0
  %1979 = vmatpush1.msra.mxu0 0.0
  %1980 = vmatprep.subr.mxu0 0.0
  %1981 = vmatpush1.msra.mxu0 0.0
  %1982 = vmatprep.subr.mxu0 0.0
  %1983 = vmatpush1.msra.mxu0 0.0
  %1984 = vmatprep.mubr.f32.mxu0 0.0
  %v1985 = vand.u32 %v1333, 4294901760
  %1986 = vmatmul.mubr.f32.gmra.mrb[0].mxu0 %v1985
  %v1987 = vpop.f32.mrb[0].mxu0
  %v1988 = vadd.f32 %v1901, %v1987
  %v1989 = vpop.f32.mrb[0].mxu0
  %1990 = vdwg.mxu0
  %v1991 = vand.u32 2147483647, %v1988
  %v1992 = vmul.f32 %v1991, 1.442695
  %v1993 = vpow.pop %v1992
  %v1994 = vmul.f32 %v1993, 0.002
  %v1995 = vsub.f32 %v1994, 0.002
  %vm1996 = vcmask 523264
  %1997 = vst.msk [vmem:[%s4] sm:$0xff] %vm1996, %v1995
  // Predicated region
  $region18: #{actor_forward.1} parent=0 // pred_check
    _
  $region19: #{actor_forward.1} parent=0 // pred_check_branch
    %1999 = sbr.rel (0) target = $region21
  $region20: #{actor_forward.1} parent=0 // pred_region
    _
  $region21: #{actor_forward.1} parent=0 // pred_fallthru
    _
  // Predicated region
  $region22: #{actor_forward.1} parent=0 // pred_check
    _
  $region23: #{actor_forward.1} parent=0 // pred_check_branch
    %2001 = sbr.rel (0) target = $region25
  $region24: #{actor_forward.1} parent=0 // pred_region
    _
  $region25: #{actor_forward.1} parent=0 // pred_fallthru
    _

</llo_original>
